<compile_context>
chip_gen: v5e
topology: v5e:2x2
jax: 0.10.0
libtpu: 0.0.40
codegen_flags: <defaults>
</compile_context>

<pallas_src>
import jax
import jax.numpy as jnp
from jax.experimental import pallas as pl
from jax.experimental.pallas import tpu as pltpu

GELU_C0 = 0.044715
GELU_C1 = 0.7978845608028654


def _gelu_tanh(v):
    # matches: v2=v*0.5; v3=v^3; v4=v3*0.044715; v5=v+v4; v6=v5*0.79788...; v7=tanh(v6); v9=v2*(v7+1)
    return (v * 0.5) * (1.0 + jnp.tanh(GELU_C1 * (v + GELU_C0 * v * v * v)))


def _tap_matmul_gelu_kernel(x_ref, w_ref, b_ref, o_ref):
    # x_ref: (nb, Cin, DHWp)    activations in native NC(D*H*W) layout, lane-padded to 128
    # w_ref: (C4, Cin)          rows ordered (kh, kw, co)              -- VMEM resident
    # b_ref: (C4, 1)                                                    -- VMEM resident
    # o_ref: (nb, 2, C4, DHWp)  [:,0] = conv taps + GELU, [:,1] = gelu(bias) odd-depth fill
    nb = x_ref.shape[0]
    dhwp = x_ref.shape[2]
    c4 = w_ref.shape[0]

    w = w_ref[...]
    b = b_ref[...]
    # Hoisted out of the per-batch loop (JAX does not CSE broadcast_in_dim).
    bb = jnp.broadcast_to(b, (c4, dhwp))
    fill = jnp.broadcast_to(_gelu_tanh(b), (c4, dhwp))

    def body(i, carry):
        v1 = jnp.dot(w, x_ref[i], preferred_element_type=jnp.float32) + bb
        o_ref[i, 0] = _gelu_tanh(v1)   # one contiguous (C4, DHWp) store
        o_ref[i, 1] = fill             # odd-depth gelu(bias) planes, written in-kernel
        return carry

    jax.lax.fori_loop(0, nb, body, 0, unroll=True)


def _pick_nb(n, cin, c4, dhwp, vmem_budget_bytes=24 * 1024 * 1024):
    # Largest divisor of N that keeps >=2 grid steps (megacore) and fits the VMEM budget
    # with double-buffered input + output blocks plus the resident weights.
    per_item = (cin * dhwp + 2 * c4 * dhwp) * 4       # f32 bytes per batch element (in + out)
    resident = (c4 * cin + c4) * 4                    # weights + bias
    nb = 1
    for cand in range(1, n + 1):
        if n % cand:
            continue
        if n >= 2 and n // cand < 2:                  # keep both v7x TensorCores busy
            continue
        if resident + 2 * cand * per_item > vmem_budget_bytes:
            continue
        nb = cand
    return nb


def _conv_taps_gelu(x3p, w2t, b2, nb):
    # x3p: (N, Cin, DHWp) f32; w2t: (C4, Cin); b2: (C4, 1)
    n, cin, dhwp = x3p.shape
    c4 = w2t.shape[0]
    return pl.pallas_call(
        _tap_matmul_gelu_kernel,
        out_shape=jax.ShapeDtypeStruct((n, 2, c4, dhwp), jnp.float32),
        grid_spec=pltpu.PrefetchScalarGridSpec(
            num_scalar_prefetch=0,
            grid=(n // nb,),
            in_specs=[
                pl.BlockSpec((nb, cin, dhwp), lambda i: (i, 0, 0)),
                pl.BlockSpec((c4, cin), lambda i: (0, 0)),   # resident weights
                pl.BlockSpec((c4, 1), lambda i: (0, 0)),     # resident bias
            ],
            out_specs=pl.BlockSpec((nb, 2, c4, dhwp), lambda i: (i, 0, 0, 0)),
        ),
        compiler_params=pltpu.CompilerParams(
            dimension_semantics=("parallel",)),
    )(x3p, w2t, b2)


def model_forward(x, weight, bias):
    # x: (N, Cin, D, H, W); weight: (Cin, Cout, 1, 2, 2) [PyTorch ConvTranspose3d]; bias: (Cout,)
    N, Cin, D, H, W = x.shape
    Cout = weight.shape[1]
    Do, Ho, Wo = 2 * D - 1, 2 * H, 2 * W
    DHW = D * H * W
    DHWp = ((DHW + 127) // 128) * 128
    C4 = 4 * Cout

    # Native-layout view of x (free reshape) + zero-pad the lane dim to a multiple of 128
    # (unmasked stores + full MXU N-tile in the kernel; pad lanes sliced off afterwards).
    x3 = x.reshape(N, Cin, DHW)
    x3p = x3 if DHWp == DHW else jnp.pad(x3, ((0, 0), (0, 0), (0, DHWp - DHW)))

    # (Cin, Cout, 1, kh, kw) -> (4*Cout, Cin), row = (kh*2 + kw)*Cout + co  (tiny, one-time)
    w2t = jnp.transpose(weight[:, :, 0, :, :], (2, 3, 1, 0)).reshape(C4, Cin)
    b2 = jnp.tile(bias, 4).reshape(C4, 1)

    nb = _pick_nb(N, Cin, C4, DHWp)
    t = _conv_taps_gelu(x3p, w2t, b2, nb)                 # (N, 2, C4, DHWp)

    # Single fused rearrange: drop pad lanes, split axes, interleave
    #   (n, p, kh, kw, co, d, h, w) -> (n, co, (d p), (h kh), (w kw)),
    # then drop the trailing odd depth plane (Do = 2D - 1).
    if DHWp != DHW:
        t = t[..., :DHW]
    t8 = t.reshape(N, 2, 2, 2, Cout, D, H, W)
    full = jnp.transpose(t8, (0, 4, 5, 1, 6, 2, 7, 3)).reshape(N, Cout, 2 * D, Ho, Wo)
    return full[:, :, :Do]                                # NCDHW, (N, Cout, Do, Ho, Wo)


def reference_forward(x, weight, bias):
    # transposed conv == input-dilated conv with spatially-flipped kernel and swapped I/O channels
    w_flip = weight[:, :, ::-1, ::-1, ::-1]
    w_conv = jnp.transpose(w_flip, (1, 0, 2, 3, 4))        # (Cout, Cin, kD, kH, kW)
    v1 = jax.lax.conv_general_dilated(
        x, w_conv,
        window_strides=(1, 1, 1),
        padding=((0, 0), (1, 1), (1, 1)),
        lhs_dilation=(2, 2, 2),
        dimension_numbers=("NCDHW", "OIDHW", "NCDHW"),
    ) + bias[None, :, None, None, None]
    return _gelu_tanh(v1)


if __name__ == "__main__":
    key = jax.random.PRNGKey(0)
    k1, k2, k3 = jax.random.split(key, 3)

    # channels fixed by the module (128 -> 64); small batch / spatial dims
    N, Cin, Cout, D, H, W = 2, 128, 64, 3, 6, 6
    x = jax.random.normal(k1, (N, Cin, D, H, W), jnp.float32)

    fan_in = Cin * 1 * 2 * 2
    bound = 1.0 / (fan_in ** 0.5)
    weight = jax.random.uniform(k2, (Cin, Cout, 1, 2, 2), jnp.float32, -bound, bound)
    bias = jax.random.uniform(k3, (Cout,), jnp.float32, -bound, bound)

    out = jax.jit(model_forward)(x, weight, bias)
    jax.block_until_ready(out)

    assert out.shape == (N, Cout, 2 * D - 1, 2 * H, 2 * W)
    ref = reference_forward(x, weight, bias)
    assert jnp.allclose(out, ref, atol=1e-4, rtol=1e-4), "mismatch vs conv_transpose reference"

    print("KERNEL_OK")
</pallas_src>

<mosaic_0001>
module attributes {stable_mosaic.version = 11 : i64} {
  func.func @_tap_matmul_gelu_kernel(%arg0: i32, %arg1: memref<1x128x128xf32, #tpu.memory_space<vmem>>, %arg2: memref<256x128xf32, #tpu.memory_space<vmem>>, %arg3: memref<256x1xf32, #tpu.memory_space<vmem>>, %arg4: memref<1x2x256x128xf32, #tpu.memory_space<vmem>>) attributes {dimension_semantics = [#tpu.dimension_semantics<parallel>], iteration_bounds = array<i64: 2>, scalar_prefetch = 0 : i64, scratch_operands = 0 : i64, tpu.core_type = #tpu.core_type<tc>, window_params = [{transform_indices = @transform_0, window_bounds = array<i64: 1, 128, 128>}, {pipeline_mode = #tpu.pipeline_mode<synchronous>, transform_indices = @transform_1, window_bounds = array<i64: 256, 128>}, {pipeline_mode = #tpu.pipeline_mode<synchronous>, transform_indices = @transform_2, window_bounds = array<i64: 256, 1>}, {transform_indices = @transform_3, window_bounds = array<i64: 1, 2, 256, 128>}]} {
    %c0 = arith.constant 0 : index
    %c0_0 = arith.constant 0 : index
    %0 = vector.load %arg2[%c0, %c0_0] : memref<256x128xf32, #tpu.memory_space<vmem>>, vector<256x128xf32>
    %c0_1 = arith.constant 0 : index
    %c0_2 = arith.constant 0 : index
    %1 = vector.load %arg3[%c0_1, %c0_2] : memref<256x1xf32, #tpu.memory_space<vmem>>, vector<256x1xf32>
    %2 = vector.shape_cast %1 : vector<256x1xf32> to vector<256x1xf32>
    %3 = vector.broadcast %2 : vector<256x1xf32> to vector<256x128xf32>
    %cst = arith.constant 5.000000e-01 : f32
    %4 = vector.broadcast %cst : f32 to vector<256x1xf32>
    %5 = arith.mulf %1, %4 : vector<256x1xf32>
    %cst_3 = arith.constant 4.471500e-02 : f32
    %6 = vector.broadcast %cst_3 : f32 to vector<256x1xf32>
    %7 = arith.mulf %6, %1 : vector<256x1xf32>
    %8 = arith.mulf %7, %1 : vector<256x1xf32>
    %9 = arith.mulf %8, %1 : vector<256x1xf32>
    %10 = arith.addf %1, %9 : vector<256x1xf32>
    %cst_4 = arith.constant 0.797884583 : f32
    %11 = vector.broadcast %cst_4 : f32 to vector<256x1xf32>
    %12 = arith.mulf %11, %10 : vector<256x1xf32>
    %13 = math.tanh %12 : vector<256x1xf32>
    %cst_5 = arith.constant 1.000000e+00 : f32
    %14 = vector.broadcast %cst_5 : f32 to vector<256x1xf32>
    %15 = arith.addf %14, %13 : vector<256x1xf32>
    %16 = arith.mulf %5, %15 : vector<256x1xf32>
    %17 = vector.shape_cast %16 : vector<256x1xf32> to vector<256x1xf32>
    %18 = vector.broadcast %17 : vector<256x1xf32> to vector<256x128xf32>
    %c0_i32 = arith.constant 0 : i32
    %19 = arith.index_cast %c0_i32 : i32 to index
    %c0_6 = arith.constant 0 : index
    %c0_7 = arith.constant 0 : index
    %20 = vector.load %arg1[%19, %c0_6, %c0_7] : memref<1x128x128xf32, #tpu.memory_space<vmem>>, vector<1x128x128xf32>
    %21 = vector.shape_cast %20 : vector<1x128x128xf32> to vector<128x128xf32>
    %cst_8 = arith.constant dense<0.000000e+00> : vector<256x128xf32>
    %22 = tpu.matmul %0, %21, %cst_8 {dimension_numbers = #tpu.dot_dimension_numbers<[1], [0], [0], [1], [0, 0, 1, 1], [], []>} : vector<256x128xf32>, vector<128x128xf32>, vector<256x128xf32> -> vector<256x128xf32>
    %23 = arith.addf %22, %3 : vector<256x128xf32>
    %cst_9 = arith.constant 5.000000e-01 : f32
    %24 = vector.broadcast %cst_9 : f32 to vector<256x128xf32>
    %25 = arith.mulf %23, %24 : vector<256x128xf32>
    %cst_10 = arith.constant 4.471500e-02 : f32
    %26 = vector.broadcast %cst_10 : f32 to vector<256x128xf32>
    %27 = arith.mulf %26, %23 : vector<256x128xf32>
    %28 = arith.mulf %27, %23 : vector<256x128xf32>
    %29 = arith.mulf %28, %23 : vector<256x128xf32>
    %30 = arith.addf %23, %29 : vector<256x128xf32>
    %cst_11 = arith.constant 0.797884583 : f32
    %31 = vector.broadcast %cst_11 : f32 to vector<256x128xf32>
    %32 = arith.mulf %31, %30 : vector<256x128xf32>
    %33 = math.tanh %32 : vector<256x128xf32>
    %cst_12 = arith.constant 1.000000e+00 : f32
    %34 = vector.broadcast %cst_12 : f32 to vector<256x128xf32>
    %35 = arith.addf %34, %33 : vector<256x128xf32>
    %36 = arith.mulf %25, %35 : vector<256x128xf32>
    %37 = arith.index_cast %c0_i32 : i32 to index
    %c0_13 = arith.constant 0 : index
    %c0_14 = arith.constant 0 : index
    %c0_15 = arith.constant 0 : index
    %38 = vector.load %arg4[%37, %c0_13, %c0_14, %c0_15] : memref<1x2x256x128xf32, #tpu.memory_space<vmem>>, vector<1x1x256x128xf32>
    %39 = vector.shape_cast %38 : vector<1x1x256x128xf32> to vector<256x128xf32>
    %40 = vector.shape_cast %36 : vector<256x128xf32> to vector<1x1x256x128xf32>
    tpu.vector_store %arg4[%37, %c0_13, %c0_14, %c0_15], %40 {strides = array<i32>} : memref<1x2x256x128xf32, #tpu.memory_space<vmem>>, vector<1x1x256x128xf32>,
    %41 = arith.index_cast %c0_i32 : i32 to index
    %c1 = arith.constant 1 : index
    %c0_16 = arith.constant 0 : index
    %c0_17 = arith.constant 0 : index
    %42 = vector.load %arg4[%41, %c1, %c0_16, %c0_17] : memref<1x2x256x128xf32, #tpu.memory_space<vmem>>, vector<1x1x256x128xf32>
    %43 = vector.shape_cast %42 : vector<1x1x256x128xf32> to vector<256x128xf32>
    %44 = vector.shape_cast %18 : vector<256x128xf32> to vector<1x1x256x128xf32>
    tpu.vector_store %arg4[%41, %c1, %c0_16, %c0_17], %44 {strides = array<i32>} : memref<1x2x256x128xf32, #tpu.memory_space<vmem>>, vector<1x1x256x128xf32>,
    %c1_i32 = arith.constant 1 : i32
    return
  }
  func.func @transform_0(%arg0: i32) -> (i32, i32, i32) {
    %c0_i32 = arith.constant 0 : i32
    %c0_i32_0 = arith.constant 0 : i32
    %c0_i32_1 = arith.constant 0 : i32
    return %arg0, %c0_i32, %c0_i32_0 : i32, i32, i32
  }
  func.func @transform_1(%arg0: i32) -> (i32, i32) {
    %c0_i32 = arith.constant 0 : i32
    %c0_i32_0 = arith.constant 0 : i32
    %c0_i32_1 = arith.constant 0 : i32
    return %c0_i32, %c0_i32_0 : i32, i32
  }
  func.func @transform_2(%arg0: i32) -> (i32, i32) {
    %c0_i32 = arith.constant 0 : i32
    %c0_i32_0 = arith.constant 0 : i32
    %c0_i32_1 = arith.constant 0 : i32
    return %c0_i32, %c0_i32_0 : i32, i32
  }
  func.func @transform_3(%arg0: i32) -> (i32, i32, i32, i32) {
    %c0_i32 = arith.constant 0 : i32
    %c0_i32_0 = arith.constant 0 : i32
    %c0_i32_1 = arith.constant 0 : i32
    %c0_i32_2 = arith.constant 0 : i32
    return %arg0, %c0_i32, %c0_i32_0, %c0_i32_1 : i32, i32, i32, i32
  }
}

</mosaic_0001>

<llo_original>
// kernel: tile.8
$region0: #{tile.8}
  #allocation0 [shape = 's32[1]{0}', space=sflag, size = 0x4, scoped, tag = 'scoped memory for tile.8']
  %s0 = inlined_call_operand.vmem [shape: f32[64], index: 0, kind: input, shape index: {}]
  %s1 = inlined_call_operand.vmem [shape: f32[4,64], index: 1, kind: output, shape index: {}]
  // Predicated region
  $region2: #{tile.8} parent=0 // pred_check
    _
  $region3: #{tile.8} parent=0 // pred_check_branch
    %3 = sbr.rel (0) target = $region5
  $region4: #{tile.8} parent=0 // pred_region
    _
  $region5: #{tile.8} parent=0 // pred_fallthru
    _
  %v4 = vld [vmem:[%s0] ss:$0 sm:$0xff]
  %5 = vst [vmem:[%s1] sm:$0xf] %v4

// kernel: tile.0
$region0: #{tile.0}
  %s0 = inlined_call_operand.vmem [shape: f32[4,64], index: 0, kind: input, shape index: {}]
  %s1 = inlined_call_operand.vmem [shape: f32[256,1], index: 1, kind: output, shape index: {}]
  $region1: #{tile.0} parent=0
    #allocation0 [shape = 'u8[4096]{0}', space=vmem, size = 0x1000, scoped, tag = 'scoped mem for input reshape']
    %s3 = ssub.s32 16, 1
    %v4 = vld [vmem:[%s0] sm:%s3]
    %5 = vst [vmem:[#allocation0] sm:%s3] %v4
    %v6 = vld [vmem:[#allocation0] sm:$0xf]
    %vm7 = vcmask 7168
    %8 = vst.msk [vmem:[%s1] sm:$0x1] %vm7, %v6
    %s9 = scalar_lea.vmem %s1, 63
    %10 = vst.msk [vmem:[%s9] sm:$0x2] %vm7, %v6
    %s11 = scalar_lea.vmem %s1, 126
    %12 = vst.msk [vmem:[%s11] sm:$0x4] %vm7, %v6
    %s13 = scalar_lea.vmem %s1, 189
    %14 = vst.msk [vmem:[%s13] sm:$0x8] %vm7, %v6
    %v15 = vld [vmem:[#allocation0] sm:$0xf]
    %16 = vrot.lane.b32.xlu0 %v15, 127
    %v17 = vpop.permute.xlu0 %16
    %vm18 = vcmask 7168
    %s19 = scalar_lea.vmem %s1, 1
    %20 = vst.msk [vmem:[%s19] sm:$0x1] %vm18, %v17
    %s21 = scalar_lea.vmem %s1, 64
    %22 = vst.msk [vmem:[%s21] sm:$0x2] %vm18, %v17
    %s23 = scalar_lea.vmem %s1, 127
    %24 = vst.msk [vmem:[%s23] sm:$0x4] %vm18, %v17
    %s25 = scalar_lea.vmem %s1, 190
    %26 = vst.msk [vmem:[%s25] sm:$0x8] %vm18, %v17
    %v27 = vld [vmem:[#allocation0] sm:$0xf]
    %28 = vrot.lane.b32.xlu0 %v27, 126
    %v29 = vpop.permute.xlu0 %28
    %vm30 = vcmask 7168
    %s31 = scalar_lea.vmem %s1, 2
    %32 = vst.msk [vmem:[%s31] sm:$0x1] %vm30, %v29
    %s33 = scalar_lea.vmem %s1, 65
    %34 = vst.msk [vmem:[%s33] sm:$0x2] %vm30, %v29
    %s35 = scalar_lea.vmem %s1, 128
    %36 = vst.msk [vmem:[%s35] sm:$0x4] %vm30, %v29
    %s37 = scalar_lea.vmem %s1, 191
    %38 = vst.msk [vmem:[%s37] sm:$0x8] %vm30, %v29
    %v39 = vld [vmem:[#allocation0] sm:$0xf]
    %40 = vrot.lane.b32.xlu0 %v39, 125
    %v41 = vpop.permute.xlu0 %40
    %vm42 = vcmask 7168
    %s43 = scalar_lea.vmem %s1, 3
    %44 = vst.msk [vmem:[%s43] sm:$0x1] %vm42, %v41
    %s45 = scalar_lea.vmem %s1, 66
    %46 = vst.msk [vmem:[%s45] sm:$0x2] %vm42, %v41
    %s47 = scalar_lea.vmem %s1, 129
    %48 = vst.msk [vmem:[%s47] sm:$0x4] %vm42, %v41
    %s49 = scalar_lea.vmem %s1, 192
    %50 = vst.msk [vmem:[%s49] sm:$0x8] %vm42, %v41
    %v51 = vld [vmem:[#allocation0] sm:$0xf]
    %52 = vrot.lane.b32.xlu0 %v51, 124
    %v53 = vpop.permute.xlu0 %52
    %vm54 = vcmask 7168
    %s55 = scalar_lea.vmem %s1, 4
    %56 = vst.msk [vmem:[%s55] sm:$0x1] %vm54, %v53
    %s57 = scalar_lea.vmem %s1, 67
    %58 = vst.msk [vmem:[%s57] sm:$0x2] %vm54, %v53
    %s59 = scalar_lea.vmem %s1, 130
    %60 = vst.msk [vmem:[%s59] sm:$0x4] %vm54, %v53
    %s61 = scalar_lea.vmem %s1, 193
    %62 = vst.msk [vmem:[%s61] sm:$0x8] %vm54, %v53
    %v63 = vld [vmem:[#allocation0] sm:$0xf]
    %64 = vrot.lane.b32.xlu0 %v63, 123
    %v65 = vpop.permute.xlu0 %64
    %vm66 = vcmask 7168
    %s67 = scalar_lea.vmem %s1, 5
    %68 = vst.msk [vmem:[%s67] sm:$0x1] %vm66, %v65
    %s69 = scalar_lea.vmem %s1, 68
    %70 = vst.msk [vmem:[%s69] sm:$0x2] %vm66, %v65
    %s71 = scalar_lea.vmem %s1, 131
    %72 = vst.msk [vmem:[%s71] sm:$0x4] %vm66, %v65
    %s73 = scalar_lea.vmem %s1, 194
    %74 = vst.msk [vmem:[%s73] sm:$0x8] %vm66, %v65
    %v75 = vld [vmem:[#allocation0] sm:$0xf]
    %76 = vrot.lane.b32.xlu0 %v75, 122
    %v77 = vpop.permute.xlu0 %76
    %vm78 = vcmask 7168
    %s79 = scalar_lea.vmem %s1, 6
    %80 = vst.msk [vmem:[%s79] sm:$0x1] %vm78, %v77
    %s81 = scalar_lea.vmem %s1, 69
    %82 = vst.msk [vmem:[%s81] sm:$0x2] %vm78, %v77
    %s83 = scalar_lea.vmem %s1, 132
    %84 = vst.msk [vmem:[%s83] sm:$0x4] %vm78, %v77
    %s85 = scalar_lea.vmem %s1, 195
    %86 = vst.msk [vmem:[%s85] sm:$0x8] %vm78, %v77
    %v87 = vld [vmem:[#allocation0] sm:$0xf]
    %88 = vrot.lane.b32.xlu0 %v87, 121
    %v89 = vpop.permute.xlu0 %88
    %vm90 = vcmask 7168
    %s91 = scalar_lea.vmem %s1, 7
    %92 = vst.msk [vmem:[%s91] sm:$0x1] %vm90, %v89
    %s93 = scalar_lea.vmem %s1, 70
    %94 = vst.msk [vmem:[%s93] sm:$0x2] %vm90, %v89
    %s95 = scalar_lea.vmem %s1, 133
    %96 = vst.msk [vmem:[%s95] sm:$0x4] %vm90, %v89
    %s97 = scalar_lea.vmem %s1, 196
    %98 = vst.msk [vmem:[%s97] sm:$0x8] %vm90, %v89
    %v99 = vld [vmem:[#allocation0] sm:$0xf]
    %100 = vrot.lane.b32.xlu0 %v99, 120
    %v101 = vpop.permute.xlu0 %100
    %vm102 = vcmask 7168
    %s103 = scalar_lea.vmem %s1, 8
    %104 = vst.msk [vmem:[%s103] sm:$0x1] %vm102, %v101
    %s105 = scalar_lea.vmem %s1, 71
    %106 = vst.msk [vmem:[%s105] sm:$0x2] %vm102, %v101
    %s107 = scalar_lea.vmem %s1, 134
    %108 = vst.msk [vmem:[%s107] sm:$0x4] %vm102, %v101
    %s109 = scalar_lea.vmem %s1, 197
    %110 = vst.msk [vmem:[%s109] sm:$0x8] %vm102, %v101
    %v111 = vld [vmem:[#allocation0] sm:$0xf]
    %112 = vrot.lane.b32.xlu0 %v111, 119
    %v113 = vpop.permute.xlu0 %112
    %vm114 = vcmask 7168
    %s115 = scalar_lea.vmem %s1, 9
    %116 = vst.msk [vmem:[%s115] sm:$0x1] %vm114, %v113
    %s117 = scalar_lea.vmem %s1, 72
    %118 = vst.msk [vmem:[%s117] sm:$0x2] %vm114, %v113
    %s119 = scalar_lea.vmem %s1, 135
    %120 = vst.msk [vmem:[%s119] sm:$0x4] %vm114, %v113
    %s121 = scalar_lea.vmem %s1, 198
    %122 = vst.msk [vmem:[%s121] sm:$0x8] %vm114, %v113
    %v123 = vld [vmem:[#allocation0] sm:$0xf]
    %124 = vrot.lane.b32.xlu0 %v123, 118
    %v125 = vpop.permute.xlu0 %124
    %vm126 = vcmask 7168
    %s127 = scalar_lea.vmem %s1, 10
    %128 = vst.msk [vmem:[%s127] sm:$0x1] %vm126, %v125
    %s129 = scalar_lea.vmem %s1, 73
    %130 = vst.msk [vmem:[%s129] sm:$0x2] %vm126, %v125
    %s131 = scalar_lea.vmem %s1, 136
    %132 = vst.msk [vmem:[%s131] sm:$0x4] %vm126, %v125
    %s133 = scalar_lea.vmem %s1, 199
    %134 = vst.msk [vmem:[%s133] sm:$0x8] %vm126, %v125
    %v135 = vld [vmem:[#allocation0] sm:$0xf]
    %136 = vrot.lane.b32.xlu0 %v135, 117
    %v137 = vpop.permute.xlu0 %136
    %vm138 = vcmask 7168
    %s139 = scalar_lea.vmem %s1, 11
    %140 = vst.msk [vmem:[%s139] sm:$0x1] %vm138, %v137
    %s141 = scalar_lea.vmem %s1, 74
    %142 = vst.msk [vmem:[%s141] sm:$0x2] %vm138, %v137
    %s143 = scalar_lea.vmem %s1, 137
    %144 = vst.msk [vmem:[%s143] sm:$0x4] %vm138, %v137
    %s145 = scalar_lea.vmem %s1, 200
    %146 = vst.msk [vmem:[%s145] sm:$0x8] %vm138, %v137
    %v147 = vld [vmem:[#allocation0] sm:$0xf]
    %148 = vrot.lane.b32.xlu0 %v147, 116
    %v149 = vpop.permute.xlu0 %148
    %vm150 = vcmask 7168
    %s151 = scalar_lea.vmem %s1, 12
    %152 = vst.msk [vmem:[%s151] sm:$0x1] %vm150, %v149
    %s153 = scalar_lea.vmem %s1, 75
    %154 = vst.msk [vmem:[%s153] sm:$0x2] %vm150, %v149
    %s155 = scalar_lea.vmem %s1, 138
    %156 = vst.msk [vmem:[%s155] sm:$0x4] %vm150, %v149
    %s157 = scalar_lea.vmem %s1, 201
    %158 = vst.msk [vmem:[%s157] sm:$0x8] %vm150, %v149
    %v159 = vld [vmem:[#allocation0] sm:$0xf]
    %160 = vrot.lane.b32.xlu0 %v159, 115
    %v161 = vpop.permute.xlu0 %160
    %vm162 = vcmask 7168
    %s163 = scalar_lea.vmem %s1, 13
    %164 = vst.msk [vmem:[%s163] sm:$0x1] %vm162, %v161
    %s165 = scalar_lea.vmem %s1, 76
    %166 = vst.msk [vmem:[%s165] sm:$0x2] %vm162, %v161
    %s167 = scalar_lea.vmem %s1, 139
    %168 = vst.msk [vmem:[%s167] sm:$0x4] %vm162, %v161
    %s169 = scalar_lea.vmem %s1, 202
    %170 = vst.msk [vmem:[%s169] sm:$0x8] %vm162, %v161
    %v171 = vld [vmem:[#allocation0] sm:$0xf]
    %172 = vrot.lane.b32.xlu0 %v171, 114
    %v173 = vpop.permute.xlu0 %172
    %vm174 = vcmask 7168
    %s175 = scalar_lea.vmem %s1, 14
    %176 = vst.msk [vmem:[%s175] sm:$0x1] %vm174, %v173
    %s177 = scalar_lea.vmem %s1, 77
    %178 = vst.msk [vmem:[%s177] sm:$0x2] %vm174, %v173
    %s179 = scalar_lea.vmem %s1, 140
    %180 = vst.msk [vmem:[%s179] sm:$0x4] %vm174, %v173
    %s181 = scalar_lea.vmem %s1, 203
    %182 = vst.msk [vmem:[%s181] sm:$0x8] %vm174, %v173
    %v183 = vld [vmem:[#allocation0] sm:$0xf]
    %184 = vrot.lane.b32.xlu0 %v183, 113
    %v185 = vpop.permute.xlu0 %184
    %vm186 = vcmask 7168
    %s187 = scalar_lea.vmem %s1, 15
    %188 = vst.msk [vmem:[%s187] sm:$0x1] %vm186, %v185
    %s189 = scalar_lea.vmem %s1, 78
    %190 = vst.msk [vmem:[%s189] sm:$0x2] %vm186, %v185
    %s191 = scalar_lea.vmem %s1, 141
    %192 = vst.msk [vmem:[%s191] sm:$0x4] %vm186, %v185
    %s193 = scalar_lea.vmem %s1, 204
    %194 = vst.msk [vmem:[%s193] sm:$0x8] %vm186, %v185
    %v195 = vld [vmem:[#allocation0] sm:$0xf]
    %196 = vrot.lane.b32.xlu0 %v195, 112
    %v197 = vpop.permute.xlu0 %196
    %vm198 = vcmask 7168
    %s199 = scalar_lea.vmem %s1, 16
    %200 = vst.msk [vmem:[%s199] sm:$0x1] %vm198, %v197
    %s201 = scalar_lea.vmem %s1, 79
    %202 = vst.msk [vmem:[%s201] sm:$0x2] %vm198, %v197
    %s203 = scalar_lea.vmem %s1, 142
    %204 = vst.msk [vmem:[%s203] sm:$0x4] %vm198, %v197
    %s205 = scalar_lea.vmem %s1, 205
    %206 = vst.msk [vmem:[%s205] sm:$0x8] %vm198, %v197
    %v207 = vld [vmem:[#allocation0] sm:$0xf]
    %208 = vrot.lane.b32.xlu0 %v207, 111
    %v209 = vpop.permute.xlu0 %208
    %vm210 = vcmask 7168
    %s211 = scalar_lea.vmem %s1, 17
    %212 = vst.msk [vmem:[%s211] sm:$0x1] %vm210, %v209
    %s213 = scalar_lea.vmem %s1, 80
    %214 = vst.msk [vmem:[%s213] sm:$0x2] %vm210, %v209
    %s215 = scalar_lea.vmem %s1, 143
    %216 = vst.msk [vmem:[%s215] sm:$0x4] %vm210, %v209
    %s217 = scalar_lea.vmem %s1, 206
    %218 = vst.msk [vmem:[%s217] sm:$0x8] %vm210, %v209
    %v219 = vld [vmem:[#allocation0] sm:$0xf]
    %220 = vrot.lane.b32.xlu0 %v219, 110
    %v221 = vpop.permute.xlu0 %220
    %vm222 = vcmask 7168
    %s223 = scalar_lea.vmem %s1, 18
    %224 = vst.msk [vmem:[%s223] sm:$0x1] %vm222, %v221
    %s225 = scalar_lea.vmem %s1, 81
    %226 = vst.msk [vmem:[%s225] sm:$0x2] %vm222, %v221
    %s227 = scalar_lea.vmem %s1, 144
    %228 = vst.msk [vmem:[%s227] sm:$0x4] %vm222, %v221
    %s229 = scalar_lea.vmem %s1, 207
    %230 = vst.msk [vmem:[%s229] sm:$0x8] %vm222, %v221
    %v231 = vld [vmem:[#allocation0] sm:$0xf]
    %232 = vrot.lane.b32.xlu0 %v231, 109
    %v233 = vpop.permute.xlu0 %232
    %vm234 = vcmask 7168
    %s235 = scalar_lea.vmem %s1, 19
    %236 = vst.msk [vmem:[%s235] sm:$0x1] %vm234, %v233
    %s237 = scalar_lea.vmem %s1, 82
    %238 = vst.msk [vmem:[%s237] sm:$0x2] %vm234, %v233
    %s239 = scalar_lea.vmem %s1, 145
    %240 = vst.msk [vmem:[%s239] sm:$0x4] %vm234, %v233
    %s241 = scalar_lea.vmem %s1, 208
    %242 = vst.msk [vmem:[%s241] sm:$0x8] %vm234, %v233
    %v243 = vld [vmem:[#allocation0] sm:$0xf]
    %244 = vrot.lane.b32.xlu0 %v243, 108
    %v245 = vpop.permute.xlu0 %244
    %vm246 = vcmask 7168
    %s247 = scalar_lea.vmem %s1, 20
    %248 = vst.msk [vmem:[%s247] sm:$0x1] %vm246, %v245
    %s249 = scalar_lea.vmem %s1, 83
    %250 = vst.msk [vmem:[%s249] sm:$0x2] %vm246, %v245
    %s251 = scalar_lea.vmem %s1, 146
    %252 = vst.msk [vmem:[%s251] sm:$0x4] %vm246, %v245
    %s253 = scalar_lea.vmem %s1, 209
    %254 = vst.msk [vmem:[%s253] sm:$0x8] %vm246, %v245
    %v255 = vld [vmem:[#allocation0] sm:$0xf]
    %256 = vrot.lane.b32.xlu0 %v255, 107
    %v257 = vpop.permute.xlu0 %256
    %vm258 = vcmask 7168
    %s259 = scalar_lea.vmem %s1, 21
    %260 = vst.msk [vmem:[%s259] sm:$0x1] %vm258, %v257
    %s261 = scalar_lea.vmem %s1, 84
    %262 = vst.msk [vmem:[%s261] sm:$0x2] %vm258, %v257
    %s263 = scalar_lea.vmem %s1, 147
    %264 = vst.msk [vmem:[%s263] sm:$0x4] %vm258, %v257
    %s265 = scalar_lea.vmem %s1, 210
    %266 = vst.msk [vmem:[%s265] sm:$0x8] %vm258, %v257
    %v267 = vld [vmem:[#allocation0] sm:$0xf]
    %268 = vrot.lane.b32.xlu0 %v267, 106
    %v269 = vpop.permute.xlu0 %268
    %vm270 = vcmask 7168
    %s271 = scalar_lea.vmem %s1, 22
    %272 = vst.msk [vmem:[%s271] sm:$0x1] %vm270, %v269
    %s273 = scalar_lea.vmem %s1, 85
    %274 = vst.msk [vmem:[%s273] sm:$0x2] %vm270, %v269
    %s275 = scalar_lea.vmem %s1, 148
    %276 = vst.msk [vmem:[%s275] sm:$0x4] %vm270, %v269
    %s277 = scalar_lea.vmem %s1, 211
    %278 = vst.msk [vmem:[%s277] sm:$0x8] %vm270, %v269
    %v279 = vld [vmem:[#allocation0] sm:$0xf]
    %280 = vrot.lane.b32.xlu0 %v279, 105
    %v281 = vpop.permute.xlu0 %280
    %vm282 = vcmask 7168
    %s283 = scalar_lea.vmem %s1, 23
    %284 = vst.msk [vmem:[%s283] sm:$0x1] %vm282, %v281
    %s285 = scalar_lea.vmem %s1, 86
    %286 = vst.msk [vmem:[%s285] sm:$0x2] %vm282, %v281
    %s287 = scalar_lea.vmem %s1, 149
    %288 = vst.msk [vmem:[%s287] sm:$0x4] %vm282, %v281
    %s289 = scalar_lea.vmem %s1, 212
    %290 = vst.msk [vmem:[%s289] sm:$0x8] %vm282, %v281
    %v291 = vld [vmem:[#allocation0] sm:$0xf]
    %292 = vrot.lane.b32.xlu0 %v291, 104
    %v293 = vpop.permute.xlu0 %292
    %vm294 = vcmask 7168
    %s295 = scalar_lea.vmem %s1, 24
    %296 = vst.msk [vmem:[%s295] sm:$0x1] %vm294, %v293
    %s297 = scalar_lea.vmem %s1, 87
    %298 = vst.msk [vmem:[%s297] sm:$0x2] %vm294, %v293
    %s299 = scalar_lea.vmem %s1, 150
    %300 = vst.msk [vmem:[%s299] sm:$0x4] %vm294, %v293
    %s301 = scalar_lea.vmem %s1, 213
    %302 = vst.msk [vmem:[%s301] sm:$0x8] %vm294, %v293
    %v303 = vld [vmem:[#allocation0] sm:$0xf]
    %304 = vrot.lane.b32.xlu0 %v303, 103
    %v305 = vpop.permute.xlu0 %304
    %vm306 = vcmask 7168
    %s307 = scalar_lea.vmem %s1, 25
    %308 = vst.msk [vmem:[%s307] sm:$0x1] %vm306, %v305
    %s309 = scalar_lea.vmem %s1, 88
    %310 = vst.msk [vmem:[%s309] sm:$0x2] %vm306, %v305
    %s311 = scalar_lea.vmem %s1, 151
    %312 = vst.msk [vmem:[%s311] sm:$0x4] %vm306, %v305
    %s313 = scalar_lea.vmem %s1, 214
    %314 = vst.msk [vmem:[%s313] sm:$0x8] %vm306, %v305
    %v315 = vld [vmem:[#allocation0] sm:$0xf]
    %316 = vrot.lane.b32.xlu0 %v315, 102
    %v317 = vpop.permute.xlu0 %316
    %vm318 = vcmask 7168
    %s319 = scalar_lea.vmem %s1, 26
    %320 = vst.msk [vmem:[%s319] sm:$0x1] %vm318, %v317
    %s321 = scalar_lea.vmem %s1, 89
    %322 = vst.msk [vmem:[%s321] sm:$0x2] %vm318, %v317
    %s323 = scalar_lea.vmem %s1, 152
    %324 = vst.msk [vmem:[%s323] sm:$0x4] %vm318, %v317
    %s325 = scalar_lea.vmem %s1, 215
    %326 = vst.msk [vmem:[%s325] sm:$0x8] %vm318, %v317
    %v327 = vld [vmem:[#allocation0] sm:$0xf]
    %328 = vrot.lane.b32.xlu0 %v327, 101
    %v329 = vpop.permute.xlu0 %328
    %vm330 = vcmask 7168
    %s331 = scalar_lea.vmem %s1, 27
    %332 = vst.msk [vmem:[%s331] sm:$0x1] %vm330, %v329
    %s333 = scalar_lea.vmem %s1, 90
    %334 = vst.msk [vmem:[%s333] sm:$0x2] %vm330, %v329
    %s335 = scalar_lea.vmem %s1, 153
    %336 = vst.msk [vmem:[%s335] sm:$0x4] %vm330, %v329
    %s337 = scalar_lea.vmem %s1, 216
    %338 = vst.msk [vmem:[%s337] sm:$0x8] %vm330, %v329
    %v339 = vld [vmem:[#allocation0] sm:$0xf]
    %340 = vrot.lane.b32.xlu0 %v339, 100
    %v341 = vpop.permute.xlu0 %340
    %vm342 = vcmask 7168
    %s343 = scalar_lea.vmem %s1, 28
    %344 = vst.msk [vmem:[%s343] sm:$0x1] %vm342, %v341
    %s345 = scalar_lea.vmem %s1, 91
    %346 = vst.msk [vmem:[%s345] sm:$0x2] %vm342, %v341
    %s347 = scalar_lea.vmem %s1, 154
    %348 = vst.msk [vmem:[%s347] sm:$0x4] %vm342, %v341
    %s349 = scalar_lea.vmem %s1, 217
    %350 = vst.msk [vmem:[%s349] sm:$0x8] %vm342, %v341
    %v351 = vld [vmem:[#allocation0] sm:$0xf]
    %352 = vrot.lane.b32.xlu0 %v351, 99
    %v353 = vpop.permute.xlu0 %352
    %vm354 = vcmask 7168
    %s355 = scalar_lea.vmem %s1, 29
    %356 = vst.msk [vmem:[%s355] sm:$0x1] %vm354, %v353
    %s357 = scalar_lea.vmem %s1, 92
    %358 = vst.msk [vmem:[%s357] sm:$0x2] %vm354, %v353
    %s359 = scalar_lea.vmem %s1, 155
    %360 = vst.msk [vmem:[%s359] sm:$0x4] %vm354, %v353
    %s361 = scalar_lea.vmem %s1, 218
    %362 = vst.msk [vmem:[%s361] sm:$0x8] %vm354, %v353
    %v363 = vld [vmem:[#allocation0] sm:$0xf]
    %364 = vrot.lane.b32.xlu0 %v363, 98
    %v365 = vpop.permute.xlu0 %364
    %vm366 = vcmask 7168
    %s367 = scalar_lea.vmem %s1, 30
    %368 = vst.msk [vmem:[%s367] sm:$0x1] %vm366, %v365
    %s369 = scalar_lea.vmem %s1, 93
    %370 = vst.msk [vmem:[%s369] sm:$0x2] %vm366, %v365
    %s371 = scalar_lea.vmem %s1, 156
    %372 = vst.msk [vmem:[%s371] sm:$0x4] %vm366, %v365
    %s373 = scalar_lea.vmem %s1, 219
    %374 = vst.msk [vmem:[%s373] sm:$0x8] %vm366, %v365
    %v375 = vld [vmem:[#allocation0] sm:$0xf]
    %376 = vrot.lane.b32.xlu0 %v375, 97
    %v377 = vpop.permute.xlu0 %376
    %vm378 = vcmask 7168
    %s379 = scalar_lea.vmem %s1, 31
    %380 = vst.msk [vmem:[%s379] sm:$0x1] %vm378, %v377
    %s381 = scalar_lea.vmem %s1, 94
    %382 = vst.msk [vmem:[%s381] sm:$0x2] %vm378, %v377
    %s383 = scalar_lea.vmem %s1, 157
    %384 = vst.msk [vmem:[%s383] sm:$0x4] %vm378, %v377
    %s385 = scalar_lea.vmem %s1, 220
    %386 = vst.msk [vmem:[%s385] sm:$0x8] %vm378, %v377
    %v387 = vld [vmem:[#allocation0] sm:$0xf]
    %388 = vrot.lane.b32.xlu0 %v387, 96
    %v389 = vpop.permute.xlu0 %388
    %vm390 = vcmask 7168
    %s391 = scalar_lea.vmem %s1, 32
    %392 = vst.msk [vmem:[%s391] sm:$0x1] %vm390, %v389
    %s393 = scalar_lea.vmem %s1, 95
    %394 = vst.msk [vmem:[%s393] sm:$0x2] %vm390, %v389
    %s395 = scalar_lea.vmem %s1, 158
    %396 = vst.msk [vmem:[%s395] sm:$0x4] %vm390, %v389
    %s397 = scalar_lea.vmem %s1, 221
    %398 = vst.msk [vmem:[%s397] sm:$0x8] %vm390, %v389
    %v399 = vld [vmem:[#allocation0] sm:$0xf]
    %400 = vrot.lane.b32.xlu0 %v399, 95
    %v401 = vpop.permute.xlu0 %400
    %vm402 = vcmask 7168
    %s403 = scalar_lea.vmem %s1, 33
    %404 = vst.msk [vmem:[%s403] sm:$0x1] %vm402, %v401
    %s405 = scalar_lea.vmem %s1, 96
    %406 = vst.msk [vmem:[%s405] sm:$0x2] %vm402, %v401
    %s407 = scalar_lea.vmem %s1, 159
    %408 = vst.msk [vmem:[%s407] sm:$0x4] %vm402, %v401
    %s409 = scalar_lea.vmem %s1, 222
    %410 = vst.msk [vmem:[%s409] sm:$0x8] %vm402, %v401
    %v411 = vld [vmem:[#allocation0] sm:$0xf]
    %412 = vrot.lane.b32.xlu0 %v411, 94
    %v413 = vpop.permute.xlu0 %412
    %vm414 = vcmask 7168
    %s415 = scalar_lea.vmem %s1, 34
    %416 = vst.msk [vmem:[%s415] sm:$0x1] %vm414, %v413
    %s417 = scalar_lea.vmem %s1, 97
    %418 = vst.msk [vmem:[%s417] sm:$0x2] %vm414, %v413
    %s419 = scalar_lea.vmem %s1, 160
    %420 = vst.msk [vmem:[%s419] sm:$0x4] %vm414, %v413
    %s421 = scalar_lea.vmem %s1, 223
    %422 = vst.msk [vmem:[%s421] sm:$0x8] %vm414, %v413
    %v423 = vld [vmem:[#allocation0] sm:$0xf]
    %424 = vrot.lane.b32.xlu0 %v423, 93
    %v425 = vpop.permute.xlu0 %424
    %vm426 = vcmask 7168
    %s427 = scalar_lea.vmem %s1, 35
    %428 = vst.msk [vmem:[%s427] sm:$0x1] %vm426, %v425
    %s429 = scalar_lea.vmem %s1, 98
    %430 = vst.msk [vmem:[%s429] sm:$0x2] %vm426, %v425
    %s431 = scalar_lea.vmem %s1, 161
    %432 = vst.msk [vmem:[%s431] sm:$0x4] %vm426, %v425
    %s433 = scalar_lea.vmem %s1, 224
    %434 = vst.msk [vmem:[%s433] sm:$0x8] %vm426, %v425
    %v435 = vld [vmem:[#allocation0] sm:$0xf]
    %436 = vrot.lane.b32.xlu0 %v435, 92
    %v437 = vpop.permute.xlu0 %436
    %vm438 = vcmask 7168
    %s439 = scalar_lea.vmem %s1, 36
    %440 = vst.msk [vmem:[%s439] sm:$0x1] %vm438, %v437
    %s441 = scalar_lea.vmem %s1, 99
    %442 = vst.msk [vmem:[%s441] sm:$0x2] %vm438, %v437
    %s443 = scalar_lea.vmem %s1, 162
    %444 = vst.msk [vmem:[%s443] sm:$0x4] %vm438, %v437
    %s445 = scalar_lea.vmem %s1, 225
    %446 = vst.msk [vmem:[%s445] sm:$0x8] %vm438, %v437
    %v447 = vld [vmem:[#allocation0] sm:$0xf]
    %448 = vrot.lane.b32.xlu0 %v447, 91
    %v449 = vpop.permute.xlu0 %448
    %vm450 = vcmask 7168
    %s451 = scalar_lea.vmem %s1, 37
    %452 = vst.msk [vmem:[%s451] sm:$0x1] %vm450, %v449
    %s453 = scalar_lea.vmem %s1, 100
    %454 = vst.msk [vmem:[%s453] sm:$0x2] %vm450, %v449
    %s455 = scalar_lea.vmem %s1, 163
    %456 = vst.msk [vmem:[%s455] sm:$0x4] %vm450, %v449
    %s457 = scalar_lea.vmem %s1, 226
    %458 = vst.msk [vmem:[%s457] sm:$0x8] %vm450, %v449
    %v459 = vld [vmem:[#allocation0] sm:$0xf]
    %460 = vrot.lane.b32.xlu0 %v459, 90
    %v461 = vpop.permute.xlu0 %460
    %vm462 = vcmask 7168
    %s463 = scalar_lea.vmem %s1, 38
    %464 = vst.msk [vmem:[%s463] sm:$0x1] %vm462, %v461
    %s465 = scalar_lea.vmem %s1, 101
    %466 = vst.msk [vmem:[%s465] sm:$0x2] %vm462, %v461
    %s467 = scalar_lea.vmem %s1, 164
    %468 = vst.msk [vmem:[%s467] sm:$0x4] %vm462, %v461
    %s469 = scalar_lea.vmem %s1, 227
    %470 = vst.msk [vmem:[%s469] sm:$0x8] %vm462, %v461
    %v471 = vld [vmem:[#allocation0] sm:$0xf]
    %472 = vrot.lane.b32.xlu0 %v471, 89
    %v473 = vpop.permute.xlu0 %472
    %vm474 = vcmask 7168
    %s475 = scalar_lea.vmem %s1, 39
    %476 = vst.msk [vmem:[%s475] sm:$0x1] %vm474, %v473
    %s477 = scalar_lea.vmem %s1, 102
    %478 = vst.msk [vmem:[%s477] sm:$0x2] %vm474, %v473
    %s479 = scalar_lea.vmem %s1, 165
    %480 = vst.msk [vmem:[%s479] sm:$0x4] %vm474, %v473
    %s481 = scalar_lea.vmem %s1, 228
    %482 = vst.msk [vmem:[%s481] sm:$0x8] %vm474, %v473
    %v483 = vld [vmem:[#allocation0] sm:$0xf]
    %484 = vrot.lane.b32.xlu0 %v483, 88
    %v485 = vpop.permute.xlu0 %484
    %vm486 = vcmask 7168
    %s487 = scalar_lea.vmem %s1, 40
    %488 = vst.msk [vmem:[%s487] sm:$0x1] %vm486, %v485
    %s489 = scalar_lea.vmem %s1, 103
    %490 = vst.msk [vmem:[%s489] sm:$0x2] %vm486, %v485
    %s491 = scalar_lea.vmem %s1, 166
    %492 = vst.msk [vmem:[%s491] sm:$0x4] %vm486, %v485
    %s493 = scalar_lea.vmem %s1, 229
    %494 = vst.msk [vmem:[%s493] sm:$0x8] %vm486, %v485
    %v495 = vld [vmem:[#allocation0] sm:$0xf]
    %496 = vrot.lane.b32.xlu0 %v495, 87
    %v497 = vpop.permute.xlu0 %496
    %vm498 = vcmask 7168
    %s499 = scalar_lea.vmem %s1, 41
    %500 = vst.msk [vmem:[%s499] sm:$0x1] %vm498, %v497
    %s501 = scalar_lea.vmem %s1, 104
    %502 = vst.msk [vmem:[%s501] sm:$0x2] %vm498, %v497
    %s503 = scalar_lea.vmem %s1, 167
    %504 = vst.msk [vmem:[%s503] sm:$0x4] %vm498, %v497
    %s505 = scalar_lea.vmem %s1, 230
    %506 = vst.msk [vmem:[%s505] sm:$0x8] %vm498, %v497
    %v507 = vld [vmem:[#allocation0] sm:$0xf]
    %508 = vrot.lane.b32.xlu0 %v507, 86
    %v509 = vpop.permute.xlu0 %508
    %vm510 = vcmask 7168
    %s511 = scalar_lea.vmem %s1, 42
    %512 = vst.msk [vmem:[%s511] sm:$0x1] %vm510, %v509
    %s513 = scalar_lea.vmem %s1, 105
    %514 = vst.msk [vmem:[%s513] sm:$0x2] %vm510, %v509
    %s515 = scalar_lea.vmem %s1, 168
    %516 = vst.msk [vmem:[%s515] sm:$0x4] %vm510, %v509
    %s517 = scalar_lea.vmem %s1, 231
    %518 = vst.msk [vmem:[%s517] sm:$0x8] %vm510, %v509
    %v519 = vld [vmem:[#allocation0] sm:$0xf]
    %520 = vrot.lane.b32.xlu0 %v519, 85
    %v521 = vpop.permute.xlu0 %520
    %vm522 = vcmask 7168
    %s523 = scalar_lea.vmem %s1, 43
    %524 = vst.msk [vmem:[%s523] sm:$0x1] %vm522, %v521
    %s525 = scalar_lea.vmem %s1, 106
    %526 = vst.msk [vmem:[%s525] sm:$0x2] %vm522, %v521
    %s527 = scalar_lea.vmem %s1, 169
    %528 = vst.msk [vmem:[%s527] sm:$0x4] %vm522, %v521
    %s529 = scalar_lea.vmem %s1, 232
    %530 = vst.msk [vmem:[%s529] sm:$0x8] %vm522, %v521
    %v531 = vld [vmem:[#allocation0] sm:$0xf]
    %532 = vrot.lane.b32.xlu0 %v531, 84
    %v533 = vpop.permute.xlu0 %532
    %vm534 = vcmask 7168
    %s535 = scalar_lea.vmem %s1, 44
    %536 = vst.msk [vmem:[%s535] sm:$0x1] %vm534, %v533
    %s537 = scalar_lea.vmem %s1, 107
    %538 = vst.msk [vmem:[%s537] sm:$0x2] %vm534, %v533
    %s539 = scalar_lea.vmem %s1, 170
    %540 = vst.msk [vmem:[%s539] sm:$0x4] %vm534, %v533
    %s541 = scalar_lea.vmem %s1, 233
    %542 = vst.msk [vmem:[%s541] sm:$0x8] %vm534, %v533
    %v543 = vld [vmem:[#allocation0] sm:$0xf]
    %544 = vrot.lane.b32.xlu0 %v543, 83
    %v545 = vpop.permute.xlu0 %544
    %vm546 = vcmask 7168
    %s547 = scalar_lea.vmem %s1, 45
    %548 = vst.msk [vmem:[%s547] sm:$0x1] %vm546, %v545
    %s549 = scalar_lea.vmem %s1, 108
    %550 = vst.msk [vmem:[%s549] sm:$0x2] %vm546, %v545
    %s551 = scalar_lea.vmem %s1, 171
    %552 = vst.msk [vmem:[%s551] sm:$0x4] %vm546, %v545
    %s553 = scalar_lea.vmem %s1, 234
    %554 = vst.msk [vmem:[%s553] sm:$0x8] %vm546, %v545
    %v555 = vld [vmem:[#allocation0] sm:$0xf]
    %556 = vrot.lane.b32.xlu0 %v555, 82
    %v557 = vpop.permute.xlu0 %556
    %vm558 = vcmask 7168
    %s559 = scalar_lea.vmem %s1, 46
    %560 = vst.msk [vmem:[%s559] sm:$0x1] %vm558, %v557
    %s561 = scalar_lea.vmem %s1, 109
    %562 = vst.msk [vmem:[%s561] sm:$0x2] %vm558, %v557
    %s563 = scalar_lea.vmem %s1, 172
    %564 = vst.msk [vmem:[%s563] sm:$0x4] %vm558, %v557
    %s565 = scalar_lea.vmem %s1, 235
    %566 = vst.msk [vmem:[%s565] sm:$0x8] %vm558, %v557
    %v567 = vld [vmem:[#allocation0] sm:$0xf]
    %568 = vrot.lane.b32.xlu0 %v567, 81
    %v569 = vpop.permute.xlu0 %568
    %vm570 = vcmask 7168
    %s571 = scalar_lea.vmem %s1, 47
    %572 = vst.msk [vmem:[%s571] sm:$0x1] %vm570, %v569
    %s573 = scalar_lea.vmem %s1, 110
    %574 = vst.msk [vmem:[%s573] sm:$0x2] %vm570, %v569
    %s575 = scalar_lea.vmem %s1, 173
    %576 = vst.msk [vmem:[%s575] sm:$0x4] %vm570, %v569
    %s577 = scalar_lea.vmem %s1, 236
    %578 = vst.msk [vmem:[%s577] sm:$0x8] %vm570, %v569
    %v579 = vld [vmem:[#allocation0] sm:$0xf]
    %580 = vrot.lane.b32.xlu0 %v579, 80
    %v581 = vpop.permute.xlu0 %580
    %vm582 = vcmask 7168
    %s583 = scalar_lea.vmem %s1, 48
    %584 = vst.msk [vmem:[%s583] sm:$0x1] %vm582, %v581
    %s585 = scalar_lea.vmem %s1, 111
    %586 = vst.msk [vmem:[%s585] sm:$0x2] %vm582, %v581
    %s587 = scalar_lea.vmem %s1, 174
    %588 = vst.msk [vmem:[%s587] sm:$0x4] %vm582, %v581
    %s589 = scalar_lea.vmem %s1, 237
    %590 = vst.msk [vmem:[%s589] sm:$0x8] %vm582, %v581
    %v591 = vld [vmem:[#allocation0] sm:$0xf]
    %592 = vrot.lane.b32.xlu0 %v591, 79
    %v593 = vpop.permute.xlu0 %592
    %vm594 = vcmask 7168
    %s595 = scalar_lea.vmem %s1, 49
    %596 = vst.msk [vmem:[%s595] sm:$0x1] %vm594, %v593
    %s597 = scalar_lea.vmem %s1, 112
    %598 = vst.msk [vmem:[%s597] sm:$0x2] %vm594, %v593
    %s599 = scalar_lea.vmem %s1, 175
    %600 = vst.msk [vmem:[%s599] sm:$0x4] %vm594, %v593
    %s601 = scalar_lea.vmem %s1, 238
    %602 = vst.msk [vmem:[%s601] sm:$0x8] %vm594, %v593
    %v603 = vld [vmem:[#allocation0] sm:$0xf]
    %604 = vrot.lane.b32.xlu0 %v603, 78
    %v605 = vpop.permute.xlu0 %604
    %vm606 = vcmask 7168
    %s607 = scalar_lea.vmem %s1, 50
    %608 = vst.msk [vmem:[%s607] sm:$0x1] %vm606, %v605
    %s609 = scalar_lea.vmem %s1, 113
    %610 = vst.msk [vmem:[%s609] sm:$0x2] %vm606, %v605
    %s611 = scalar_lea.vmem %s1, 176
    %612 = vst.msk [vmem:[%s611] sm:$0x4] %vm606, %v605
    %s613 = scalar_lea.vmem %s1, 239
    %614 = vst.msk [vmem:[%s613] sm:$0x8] %vm606, %v605
    %v615 = vld [vmem:[#allocation0] sm:$0xf]
    %616 = vrot.lane.b32.xlu0 %v615, 77
    %v617 = vpop.permute.xlu0 %616
    %vm618 = vcmask 7168
    %s619 = scalar_lea.vmem %s1, 51
    %620 = vst.msk [vmem:[%s619] sm:$0x1] %vm618, %v617
    %s621 = scalar_lea.vmem %s1, 114
    %622 = vst.msk [vmem:[%s621] sm:$0x2] %vm618, %v617
    %s623 = scalar_lea.vmem %s1, 177
    %624 = vst.msk [vmem:[%s623] sm:$0x4] %vm618, %v617
    %s625 = scalar_lea.vmem %s1, 240
    %626 = vst.msk [vmem:[%s625] sm:$0x8] %vm618, %v617
    %v627 = vld [vmem:[#allocation0] sm:$0xf]
    %628 = vrot.lane.b32.xlu0 %v627, 76
    %v629 = vpop.permute.xlu0 %628
    %vm630 = vcmask 7168
    %s631 = scalar_lea.vmem %s1, 52
    %632 = vst.msk [vmem:[%s631] sm:$0x1] %vm630, %v629
    %s633 = scalar_lea.vmem %s1, 115
    %634 = vst.msk [vmem:[%s633] sm:$0x2] %vm630, %v629
    %s635 = scalar_lea.vmem %s1, 178
    %636 = vst.msk [vmem:[%s635] sm:$0x4] %vm630, %v629
    %s637 = scalar_lea.vmem %s1, 241
    %638 = vst.msk [vmem:[%s637] sm:$0x8] %vm630, %v629
    %v639 = vld [vmem:[#allocation0] sm:$0xf]
    %640 = vrot.lane.b32.xlu0 %v639, 75
    %v641 = vpop.permute.xlu0 %640
    %vm642 = vcmask 7168
    %s643 = scalar_lea.vmem %s1, 53
    %644 = vst.msk [vmem:[%s643] sm:$0x1] %vm642, %v641
    %s645 = scalar_lea.vmem %s1, 116
    %646 = vst.msk [vmem:[%s645] sm:$0x2] %vm642, %v641
    %s647 = scalar_lea.vmem %s1, 179
    %648 = vst.msk [vmem:[%s647] sm:$0x4] %vm642, %v641
    %s649 = scalar_lea.vmem %s1, 242
    %650 = vst.msk [vmem:[%s649] sm:$0x8] %vm642, %v641
    %v651 = vld [vmem:[#allocation0] sm:$0xf]
    %652 = vrot.lane.b32.xlu0 %v651, 74
    %v653 = vpop.permute.xlu0 %652
    %vm654 = vcmask 7168
    %s655 = scalar_lea.vmem %s1, 54
    %656 = vst.msk [vmem:[%s655] sm:$0x1] %vm654, %v653
    %s657 = scalar_lea.vmem %s1, 117
    %658 = vst.msk [vmem:[%s657] sm:$0x2] %vm654, %v653
    %s659 = scalar_lea.vmem %s1, 180
    %660 = vst.msk [vmem:[%s659] sm:$0x4] %vm654, %v653
    %s661 = scalar_lea.vmem %s1, 243
    %662 = vst.msk [vmem:[%s661] sm:$0x8] %vm654, %v653
    %v663 = vld [vmem:[#allocation0] sm:$0xf]
    %664 = vrot.lane.b32.xlu0 %v663, 73
    %v665 = vpop.permute.xlu0 %664
    %vm666 = vcmask 7168
    %s667 = scalar_lea.vmem %s1, 55
    %668 = vst.msk [vmem:[%s667] sm:$0x1] %vm666, %v665
    %s669 = scalar_lea.vmem %s1, 118
    %670 = vst.msk [vmem:[%s669] sm:$0x2] %vm666, %v665
    %s671 = scalar_lea.vmem %s1, 181
    %672 = vst.msk [vmem:[%s671] sm:$0x4] %vm666, %v665
    %s673 = scalar_lea.vmem %s1, 244
    %674 = vst.msk [vmem:[%s673] sm:$0x8] %vm666, %v665
    %v675 = vld [vmem:[#allocation0] sm:$0xf]
    %676 = vrot.lane.b32.xlu0 %v675, 72
    %v677 = vpop.permute.xlu0 %676
    %vm678 = vcmask 7168
    %s679 = scalar_lea.vmem %s1, 56
    %680 = vst.msk [vmem:[%s679] sm:$0x1] %vm678, %v677
    %s681 = scalar_lea.vmem %s1, 119
    %682 = vst.msk [vmem:[%s681] sm:$0x2] %vm678, %v677
    %s683 = scalar_lea.vmem %s1, 182
    %684 = vst.msk [vmem:[%s683] sm:$0x4] %vm678, %v677
    %s685 = scalar_lea.vmem %s1, 245
    %686 = vst.msk [vmem:[%s685] sm:$0x8] %vm678, %v677
    %v687 = vld [vmem:[#allocation0] sm:$0xf]
    %688 = vrot.lane.b32.xlu0 %v687, 71
    %v689 = vpop.permute.xlu0 %688
    %vm690 = vcmask 7168
    %s691 = scalar_lea.vmem %s1, 57
    %692 = vst.msk [vmem:[%s691] sm:$0x1] %vm690, %v689
    %s693 = scalar_lea.vmem %s1, 120
    %694 = vst.msk [vmem:[%s693] sm:$0x2] %vm690, %v689
    %s695 = scalar_lea.vmem %s1, 183
    %696 = vst.msk [vmem:[%s695] sm:$0x4] %vm690, %v689
    %s697 = scalar_lea.vmem %s1, 246
    %698 = vst.msk [vmem:[%s697] sm:$0x8] %vm690, %v689
    %v699 = vld [vmem:[#allocation0] sm:$0xf]
    %700 = vrot.lane.b32.xlu0 %v699, 70
    %v701 = vpop.permute.xlu0 %700
    %vm702 = vcmask 7168
    %s703 = scalar_lea.vmem %s1, 58
    %704 = vst.msk [vmem:[%s703] sm:$0x1] %vm702, %v701
    %s705 = scalar_lea.vmem %s1, 121
    %706 = vst.msk [vmem:[%s705] sm:$0x2] %vm702, %v701
    %s707 = scalar_lea.vmem %s1, 184
    %708 = vst.msk [vmem:[%s707] sm:$0x4] %vm702, %v701
    %s709 = scalar_lea.vmem %s1, 247
    %710 = vst.msk [vmem:[%s709] sm:$0x8] %vm702, %v701
    %v711 = vld [vmem:[#allocation0] sm:$0xf]
    %712 = vrot.lane.b32.xlu0 %v711, 69
    %v713 = vpop.permute.xlu0 %712
    %vm714 = vcmask 7168
    %s715 = scalar_lea.vmem %s1, 59
    %716 = vst.msk [vmem:[%s715] sm:$0x1] %vm714, %v713
    %s717 = scalar_lea.vmem %s1, 122
    %718 = vst.msk [vmem:[%s717] sm:$0x2] %vm714, %v713
    %s719 = scalar_lea.vmem %s1, 185
    %720 = vst.msk [vmem:[%s719] sm:$0x4] %vm714, %v713
    %s721 = scalar_lea.vmem %s1, 248
    %722 = vst.msk [vmem:[%s721] sm:$0x8] %vm714, %v713
    %v723 = vld [vmem:[#allocation0] sm:$0xf]
    %724 = vrot.lane.b32.xlu0 %v723, 68
    %v725 = vpop.permute.xlu0 %724
    %vm726 = vcmask 7168
    %s727 = scalar_lea.vmem %s1, 60
    %728 = vst.msk [vmem:[%s727] sm:$0x1] %vm726, %v725
    %s729 = scalar_lea.vmem %s1, 123
    %730 = vst.msk [vmem:[%s729] sm:$0x2] %vm726, %v725
    %s731 = scalar_lea.vmem %s1, 186
    %732 = vst.msk [vmem:[%s731] sm:$0x4] %vm726, %v725
    %s733 = scalar_lea.vmem %s1, 249
    %734 = vst.msk [vmem:[%s733] sm:$0x8] %vm726, %v725
    %v735 = vld [vmem:[#allocation0] sm:$0xf]
    %736 = vrot.lane.b32.xlu0 %v735, 67
    %v737 = vpop.permute.xlu0 %736
    %vm738 = vcmask 7168
    %s739 = scalar_lea.vmem %s1, 61
    %740 = vst.msk [vmem:[%s739] sm:$0x1] %vm738, %v737
    %s741 = scalar_lea.vmem %s1, 124
    %742 = vst.msk [vmem:[%s741] sm:$0x2] %vm738, %v737
    %s743 = scalar_lea.vmem %s1, 187
    %744 = vst.msk [vmem:[%s743] sm:$0x4] %vm738, %v737
    %s745 = scalar_lea.vmem %s1, 250
    %746 = vst.msk [vmem:[%s745] sm:$0x8] %vm738, %v737
    %v747 = vld [vmem:[#allocation0] sm:$0xf]
    %748 = vrot.lane.b32.xlu0 %v747, 66
    %v749 = vpop.permute.xlu0 %748
    %vm750 = vcmask 7168
    %s751 = scalar_lea.vmem %s1, 62
    %752 = vst.msk [vmem:[%s751] sm:$0x1] %vm750, %v749
    %s753 = scalar_lea.vmem %s1, 125
    %754 = vst.msk [vmem:[%s753] sm:$0x2] %vm750, %v749
    %s755 = scalar_lea.vmem %s1, 188
    %756 = vst.msk [vmem:[%s755] sm:$0x4] %vm750, %v749
    %s757 = scalar_lea.vmem %s1, 251
    %758 = vst.msk [vmem:[%s757] sm:$0x8] %vm750, %v749
    %v759 = vld [vmem:[#allocation0] sm:$0xf]
    %760 = vrot.lane.b32.xlu0 %v759, 65
    %v761 = vpop.permute.xlu0 %760
    %vm762 = vcmask 7168
    %s763 = scalar_lea.vmem %s1, 63
    %764 = vst.msk [vmem:[%s763] sm:$0x1] %vm762, %v761
    %s765 = scalar_lea.vmem %s1, 126
    %766 = vst.msk [vmem:[%s765] sm:$0x2] %vm762, %v761
    %s767 = scalar_lea.vmem %s1, 189
    %768 = vst.msk [vmem:[%s767] sm:$0x4] %vm762, %v761
    %s769 = scalar_lea.vmem %s1, 252
    %770 = vst.msk [vmem:[%s769] sm:$0x8] %vm762, %v761

// kernel: model_forward.1
$region0: #{model_forward.1}
  #allocation0 [shape = 'u32[]', space=smem, size = 0x4, offset = 0x4, fixed_abs, tag = 'smem constant byte address 0x4 - core index']
  #allocation1 [shape = 'u32[72,128]{1,0:T(1,128)}', space=vmem, size = 0x9000, scoped, tag = 'internal scratch']
  %s0 = inlined_call_operand.vmem [shape: f32[2,128,128], index: 0, kind: input, shape index: {}]
  %s1 = inlined_call_operand.vmem [shape: f32[256,128], index: 1, kind: input, shape index: {}]
  %s2 = inlined_call_operand.vmem [shape: f32[256,1], index: 2, kind: input, shape index: {}]
  %s3 = inlined_call_operand.vmem [shape: f32[2,2,256,128], index: 3, kind: output, shape index: {}]
  %s4 = sld [smem:[#allocation0]]
  $region45: #{model_forward.1} parent=0
    _
  %s6 = ssub.s32 1, %s4
  %s7 = scalar_select 0, %s6, %s4
  loop: start=0, step=1, limit=4
  $region2: #{model_forward.1} parent=0 // loop_pre_header
    _
  $region3: #{model_forward.1} parent=0 // loop_header
    %s9 = sphi 0, %s13
    %p10 = scmp.ge.s32.totalorder %s9, 4
    %s19 = sphi 0, %s21
    %s22 = sphi 0, %s19
    %s23 = sphi 0, %s22
    %s39 = sphi 0, %s23
    %s43 = sphi 0, %s43
    %s45 = sphi 0, %s43
    %s46 = sphi 0, %s45
    %s60 = sphi 0, %s46
    %s64 = sphi 0, %s64
    %s66 = sphi 0, %s64
    %s67 = sphi 0, %s66
    %s81 = sphi 0, %s67
    %s87 = sphi 0, %s89
    %s90 = sphi 0, %s87
    %s91 = sphi 0, %s90
    %s107 = sphi 0, %s91
  $region4: #{model_forward.1} parent=0 // loop_header_branch
    %12 = sbr.rel (%p10) target = $region8
  $region5: #{model_forward.1} parent=0 // loop_body
    %s14 = ssub.s32 %s9, 1
    %s15 = ssub.s32 %s9, 2
    %s16 = sadd.s32 %s9, 1
    %s17 = ssub.s32 %s9, %s16
    %p18 = scmp.eq.s32.totalorder %s17, 0
    %s20 = sadd.s32 %s19, 1
    %s21 = scalar_select %p18, %s19, %s20
    %p24 = pneg %p18
    %p25 = scmp.eq.s32.totalorder %s9, 1
    %p26 = por %p24, %p25
    %p27 = scmp.ne.s32.totalorder %s19, %s22
    %p28 = scmp.eq.s32.totalorder %s9, 0
    %p29 = por %p27, %p28
    %p30 = scmp.ne.s32.totalorder %s19, %s22
    %p31 = scmp.eq.s32.totalorder %s14, 1
    %p32 = por %p30, %p31
    %p33 = scmp.ne.s32.totalorder %s22, %s23
    %p34 = scmp.eq.s32.totalorder %s14, 0
    %p35 = por %p33, %p34
    %p36 = scmp.ne.s32.totalorder %s22, %s23
    %p37 = scmp.eq.s32.totalorder %s15, 1
    %p38 = por %p36, %p37
    %p40 = scmp.ne.s32.totalorder %s23, %s39
    %p41 = scmp.eq.s32.totalorder %s15, 0
    %p42 = por %p40, %p41
    %s44 = sadd.s32 %s43, 1
    %p47 = scmp.eq.s32.totalorder %s9, 1
    %p48 = scmp.ne.s32.totalorder %s43, %s45
    %p49 = scmp.eq.s32.totalorder %s9, 0
    %p50 = por %p48, %p49
    %p51 = scmp.ne.s32.totalorder %s43, %s45
    %p52 = scmp.eq.s32.totalorder %s14, 1
    %p53 = por %p51, %p52
    %p54 = scmp.ne.s32.totalorder %s45, %s46
    %p55 = scmp.eq.s32.totalorder %s14, 0
    %p56 = por %p54, %p55
    %p57 = scmp.ne.s32.totalorder %s45, %s46
    %p58 = scmp.eq.s32.totalorder %s15, 1
    %p59 = por %p57, %p58
    %p61 = scmp.ne.s32.totalorder %s46, %s60
    %p62 = scmp.eq.s32.totalorder %s15, 0
    %p63 = por %p61, %p62
    %s65 = sadd.s32 %s64, 1
    %p68 = scmp.eq.s32.totalorder %s9, 1
    %p69 = scmp.ne.s32.totalorder %s64, %s66
    %p70 = scmp.eq.s32.totalorder %s9, 0
    %p71 = por %p69, %p70
    %p72 = scmp.ne.s32.totalorder %s64, %s66
    %p73 = scmp.eq.s32.totalorder %s14, 1
    %p74 = por %p72, %p73
    %p75 = scmp.ne.s32.totalorder %s66, %s67
    %p76 = scmp.eq.s32.totalorder %s14, 0
    %p77 = por %p75, %p76
    %p78 = scmp.ne.s32.totalorder %s66, %s67
    %p79 = scmp.eq.s32.totalorder %s15, 1
    %p80 = por %p78, %p79
    %p82 = scmp.ne.s32.totalorder %s67, %s81
    %p83 = scmp.eq.s32.totalorder %s15, 0
    %p84 = por %p82, %p83
    %s85 = ssub.s32 %s9, %s16
    %p86 = scmp.eq.s32.totalorder %s85, 0
    %s88 = sadd.s32 %s87, 1
    %s89 = scalar_select %p86, %s87, %s88
    %p92 = pneg %p86
    %p93 = scmp.eq.s32.totalorder %s9, 1
    %p94 = por %p92, %p93
    %p95 = scmp.ne.s32.totalorder %s87, %s90
    %p96 = scmp.eq.s32.totalorder %s9, 0
    %p97 = por %p95, %p96
    %p98 = scmp.ne.s32.totalorder %s87, %s90
    %p99 = scmp.eq.s32.totalorder %s14, 1
    %p100 = por %p98, %p99
    %p101 = scmp.ne.s32.totalorder %s90, %s91
    %p102 = scmp.eq.s32.totalorder %s14, 0
    %p103 = por %p101, %p102
    %p104 = scmp.ne.s32.totalorder %s90, %s91
    %p105 = scmp.eq.s32.totalorder %s15, 1
    %p106 = por %p104, %p105
    %p108 = scmp.ne.s32.totalorder %s91, %s107
    %p109 = scmp.eq.s32.totalorder %s15, 0
    %p110 = por %p108, %p109
    %p111 = scmp.le.s32.totalorder 1, %s9
    %p112 = scmp.lt.s32.totalorder %s9, 3
    %p113 = pnand %p111, %p112
    %p114 = pneg %p113
    // Predicated region
    $region9: #{model_forward.1} parent=5 // pred_check
      _
    $region10: #{model_forward.1} parent=5 // pred_check_branch
      %116 = sbr.rel (%p113) target = $region12
    $region11: #{model_forward.1} parent=5 // pred_region
      %s117 = ssub.s32 %s9, 1
      // Predicated region
      $region13: #{model_forward.1} parent=11 // pred_check
        %p118 = pneg %p56
      $region14: #{model_forward.1} parent=11 // pred_check_branch
        %120 = sbr.rel (%p118) target = $region16
      $region15: #{model_forward.1} parent=11 // pred_region
        _
      $region16: #{model_forward.1} parent=11 // pred_fallthru
        _
      // Predicated region
      $region17: #{model_forward.1} parent=11 // pred_check
        %p121 = pneg %p77
      $region18: #{model_forward.1} parent=11 // pred_check_branch
        %123 = sbr.rel (%p121) target = $region20
      $region19: #{model_forward.1} parent=11 // pred_region
        _
      $region20: #{model_forward.1} parent=11 // pred_fallthru
        _
    $region12: #{model_forward.1} parent=5 // pred_fallthru
      _
    %p124 = scmp.lt.s32.totalorder %s9, 2
    // Predicated region
    $region21: #{model_forward.1} parent=5 // pred_check
      %p125 = pneg %p124
    $region22: #{model_forward.1} parent=5 // pred_check_branch
      %127 = sbr.rel (%p125) target = $region24
    $region23: #{model_forward.1} parent=5 // pred_region
      // Predicated region
      $region25: #{model_forward.1} parent=23 // pred_check
        %p128 = pneg %p29
      $region26: #{model_forward.1} parent=23 // pred_check_branch
        %130 = sbr.rel (%p128) target = $region28
      $region27: #{model_forward.1} parent=23 // pred_region
        %p131 = scmp.lt.s32.totalorder %s9, 1
        %s132 = scalar_select %p131, %s9, 1
        %s133 = smul.addr %s132, 16
        %s134 = smul.addr %s133, 8
        %s135 = scalar_lea.vmem %s0, %s134
      $region28: #{model_forward.1} parent=23 // pred_fallthru
        _
    $region24: #{model_forward.1} parent=5 // pred_fallthru
      _
    %p136 = scmp.le.s32.totalorder 1, %s9
    %p137 = scmp.lt.s32.totalorder %s9, 3
    %p138 = pnand %p136, %p137
    %p139 = pneg %p138
    // Predicated region
    $region29: #{model_forward.1} parent=5 // pred_check
      _
    $region30: #{model_forward.1} parent=5 // pred_check_branch
      %141 = sbr.rel (%p138) target = $region32
    $region31: #{model_forward.1} parent=5 // pred_region
      %s142 = ssub.s32 %s9, 1
      %p143 = scmp.lt.s32.totalorder %s14, 1
      %s144 = scalar_select %p143, %s14, 1
      %s145 = smul.addr %s144, 16
      %s146 = smul.addr %s145, 8
      %s147 = scalar_lea.vmem %s0, %s146
      %p148 = pneg %p35
      %p149 = pneg %p32
      %p150 = pneg %p56
      %p151 = pneg %p53
      %p152 = pneg %p77
      %p153 = pneg %p74
      %p154 = pneg %p103
      %p155 = pneg %p100
      %p156 = scmp.lt.s32.totalorder %s14, 1
      %s157 = scalar_select %p156, %s14, 1
      %s158 = smul.addr %s157, 64
      %s159 = smul.addr %s158, 8
      %s160 = scalar_lea.vmem %s3, %s159
      %p161 = scmp.lt.s32.totalorder %s14, 1
      %s162 = scalar_select %p161, %s14, 1
      %s163 = smul.addr %s162, 16
      %s164 = smul.addr %s163, 8
      %s165 = scalar_lea.vmem %s0, %s164
      %p166 = scmp.lt.s32.totalorder %s14, 1
      %s167 = scalar_select %p166, %s14, 1
      %s168 = smul.addr %s167, 64
      %s169 = smul.addr %s168, 8
      %s170 = scalar_lea.vmem %s3, %s169
      %v171 = vld [vmem:[%s1] sm:$0xff]
      %v172 = vld [vmem:[%s1 + $0x8] sm:$0xff]
      %v173 = vld [vmem:[%s1 + $0x10] sm:$0xff]
      %v174 = vld [vmem:[%s1 + $0x18] sm:$0xff]
      %v175 = vld [vmem:[%s1 + $0x20] sm:$0xff]
      %v176 = vld [vmem:[%s1 + $0x28] sm:$0xff]
      %v177 = vld [vmem:[%s1 + $0x30] sm:$0xff]
      %v178 = vld [vmem:[%s1 + $0x38] sm:$0xff]
      %v179 = vld [vmem:[%s1 + $0x40] sm:$0xff]
      %v180 = vld [vmem:[%s1 + $0x48] sm:$0xff]
      %v181 = vld [vmem:[%s1 + $0x50] sm:$0xff]
      %v182 = vld [vmem:[%s1 + $0x58] sm:$0xff]
      %v183 = vld [vmem:[%s1 + $0x60] sm:$0xff]
      %v184 = vld [vmem:[%s1 + $0x68] sm:$0xff]
      %v185 = vld [vmem:[%s1 + $0x70] sm:$0xff]
      %v186 = vld [vmem:[%s1 + $0x78] sm:$0xff]
      %v187 = vld [vmem:[%s1 + $0x80] sm:$0xff]
      %v188 = vld [vmem:[%s1 + $0x88] sm:$0xff]
      %v189 = vld [vmem:[%s1 + $0x90] sm:$0xff]
      %v190 = vld [vmem:[%s1 + $0x98] sm:$0xff]
      %v191 = vld [vmem:[%s1 + $0xa0] sm:$0xff]
      %v192 = vld [vmem:[%s1 + $0xa8] sm:$0xff]
      %v193 = vld [vmem:[%s1 + $0xb0] sm:$0xff]
      %v194 = vld [vmem:[%s1 + $0xb8] sm:$0xff]
      %v195 = vld [vmem:[%s1 + $0xc0] sm:$0xff]
      %v196 = vld [vmem:[%s1 + $0xc8] sm:$0xff]
      %v197 = vld [vmem:[%s1 + $0xd0] sm:$0xff]
      %v198 = vld [vmem:[%s1 + $0xd8] sm:$0xff]
      %v199 = vld [vmem:[%s1 + $0xe0] sm:$0xff]
      %v200 = vld [vmem:[%s1 + $0xe8] sm:$0xff]
      %v201 = vld [vmem:[%s1 + $0xf0] sm:$0xff]
      %v202 = vld [vmem:[%s1 + $0xf8] sm:$0xff]
      %v203 = vld [vmem:[%s2] sm:$0xff]
      %v204 = vld [vmem:[%s2 + $0x8] sm:$0xff]
      %v205 = vld [vmem:[%s2 + $0x10] sm:$0xff]
      %v206 = vld [vmem:[%s2 + $0x18] sm:$0xff]
      %v207 = vld [vmem:[%s2 + $0x20] sm:$0xff]
      %v208 = vld [vmem:[%s2 + $0x28] sm:$0xff]
      %v209 = vld [vmem:[%s2 + $0x30] sm:$0xff]
      %v210 = vld [vmem:[%s2 + $0x38] sm:$0xff]
      %v211 = vld [vmem:[%s2 + $0x40] sm:$0xff]
      %v212 = vld [vmem:[%s2 + $0x48] sm:$0xff]
      %v213 = vld [vmem:[%s2 + $0x50] sm:$0xff]
      %v214 = vld [vmem:[%s2 + $0x58] sm:$0xff]
      %v215 = vld [vmem:[%s2 + $0x60] sm:$0xff]
      %v216 = vld [vmem:[%s2 + $0x68] sm:$0xff]
      %v217 = vld [vmem:[%s2 + $0x70] sm:$0xff]
      %v218 = vld [vmem:[%s2 + $0x78] sm:$0xff]
      %v219 = vld [vmem:[%s2 + $0x80] sm:$0xff]
      %v220 = vld [vmem:[%s2 + $0x88] sm:$0xff]
      %v221 = vld [vmem:[%s2 + $0x90] sm:$0xff]
      %v222 = vld [vmem:[%s2 + $0x98] sm:$0xff]
      %v223 = vld [vmem:[%s2 + $0xa0] sm:$0xff]
      %v224 = vld [vmem:[%s2 + $0xa8] sm:$0xff]
      %v225 = vld [vmem:[%s2 + $0xb0] sm:$0xff]
      %v226 = vld [vmem:[%s2 + $0xb8] sm:$0xff]
      %v227 = vld [vmem:[%s2 + $0xc0] sm:$0xff]
      %v228 = vld [vmem:[%s2 + $0xc8] sm:$0xff]
      %v229 = vld [vmem:[%s2 + $0xd0] sm:$0xff]
      %v230 = vld [vmem:[%s2 + $0xd8] sm:$0xff]
      %v231 = vld [vmem:[%s2 + $0xe0] sm:$0xff]
      %v232 = vld [vmem:[%s2 + $0xe8] sm:$0xff]
      %v233 = vld [vmem:[%s2 + $0xf0] sm:$0xff]
      %v234 = vld [vmem:[%s2 + $0xf8] sm:$0xff]
      %236 = vset.pattern.permute.xlu0 0
      %237 = vperm.xlu0 %236, %v203
      %v238 = vpop.permute.xlu0 %237
      %241 = vset.pattern.permute.xlu0 0
      %242 = vperm.xlu0 %241, %v204
      %v243 = vpop.permute.xlu0 %242
      %246 = vset.pattern.permute.xlu0 0
      %247 = vperm.xlu0 %246, %v205
      %v248 = vpop.permute.xlu0 %247
      %251 = vset.pattern.permute.xlu0 0
      %252 = vperm.xlu0 %251, %v206
      %v253 = vpop.permute.xlu0 %252
      %256 = vset.pattern.permute.xlu0 0
      %257 = vperm.xlu0 %256, %v207
      %v258 = vpop.permute.xlu0 %257
      %261 = vset.pattern.permute.xlu0 0
      %262 = vperm.xlu0 %261, %v208
      %v263 = vpop.permute.xlu0 %262
      %266 = vset.pattern.permute.xlu0 0
      %267 = vperm.xlu0 %266, %v209
      %v268 = vpop.permute.xlu0 %267
      %271 = vset.pattern.permute.xlu0 0
      %272 = vperm.xlu0 %271, %v210
      %v273 = vpop.permute.xlu0 %272
      %276 = vset.pattern.permute.xlu0 0
      %277 = vperm.xlu0 %276, %v211
      %v278 = vpop.permute.xlu0 %277
      %281 = vset.pattern.permute.xlu0 0
      %282 = vperm.xlu0 %281, %v212
      %v283 = vpop.permute.xlu0 %282
      %286 = vset.pattern.permute.xlu0 0
      %287 = vperm.xlu0 %286, %v213
      %v288 = vpop.permute.xlu0 %287
      %291 = vset.pattern.permute.xlu0 0
      %292 = vperm.xlu0 %291, %v214
      %v293 = vpop.permute.xlu0 %292
      %296 = vset.pattern.permute.xlu0 0
      %297 = vperm.xlu0 %296, %v215
      %v298 = vpop.permute.xlu0 %297
      %301 = vset.pattern.permute.xlu0 0
      %302 = vperm.xlu0 %301, %v216
      %v303 = vpop.permute.xlu0 %302
      %306 = vset.pattern.permute.xlu0 0
      %307 = vperm.xlu0 %306, %v217
      %v308 = vpop.permute.xlu0 %307
      %311 = vset.pattern.permute.xlu0 0
      %312 = vperm.xlu0 %311, %v218
      %v313 = vpop.permute.xlu0 %312
      %316 = vset.pattern.permute.xlu0 0
      %317 = vperm.xlu0 %316, %v219
      %v318 = vpop.permute.xlu0 %317
      %321 = vset.pattern.permute.xlu0 0
      %322 = vperm.xlu0 %321, %v220
      %v323 = vpop.permute.xlu0 %322
      %326 = vset.pattern.permute.xlu0 0
      %327 = vperm.xlu0 %326, %v221
      %v328 = vpop.permute.xlu0 %327
      %331 = vset.pattern.permute.xlu0 0
      %332 = vperm.xlu0 %331, %v222
      %v333 = vpop.permute.xlu0 %332
      %336 = vset.pattern.permute.xlu0 0
      %337 = vperm.xlu0 %336, %v223
      %v338 = vpop.permute.xlu0 %337
      %341 = vset.pattern.permute.xlu0 0
      %342 = vperm.xlu0 %341, %v224
      %v343 = vpop.permute.xlu0 %342
      %346 = vset.pattern.permute.xlu0 0
      %347 = vperm.xlu0 %346, %v225
      %v348 = vpop.permute.xlu0 %347
      %351 = vset.pattern.permute.xlu0 0
      %352 = vperm.xlu0 %351, %v226
      %v353 = vpop.permute.xlu0 %352
      %356 = vset.pattern.permute.xlu0 0
      %357 = vperm.xlu0 %356, %v227
      %v358 = vpop.permute.xlu0 %357
      %361 = vset.pattern.permute.xlu0 0
      %362 = vperm.xlu0 %361, %v228
      %v363 = vpop.permute.xlu0 %362
      %366 = vset.pattern.permute.xlu0 0
      %367 = vperm.xlu0 %366, %v229
      %v368 = vpop.permute.xlu0 %367
      %371 = vset.pattern.permute.xlu0 0
      %372 = vperm.xlu0 %371, %v230
      %v373 = vpop.permute.xlu0 %372
      %376 = vset.pattern.permute.xlu0 0
      %377 = vperm.xlu0 %376, %v231
      %v378 = vpop.permute.xlu0 %377
      %381 = vset.pattern.permute.xlu0 0
      %382 = vperm.xlu0 %381, %v232
      %v383 = vpop.permute.xlu0 %382
      %386 = vset.pattern.permute.xlu0 0
      %387 = vperm.xlu0 %386, %v233
      %v388 = vpop.permute.xlu0 %387
      %391 = vset.pattern.permute.xlu0 0
      %392 = vperm.xlu0 %391, %v234
      %v393 = vpop.permute.xlu0 %392
      %v395 = vmul.f32 %v203, 0.5
      %v396 = vmul.f32 %v204, 0.5
      %v397 = vmul.f32 %v205, 0.5
      %v398 = vmul.f32 %v206, 0.5
      %v399 = vmul.f32 %v207, 0.5
      %v400 = vmul.f32 %v208, 0.5
      %v401 = vmul.f32 %v209, 0.5
      %v402 = vmul.f32 %v210, 0.5
      %v403 = vmul.f32 %v211, 0.5
      %v404 = vmul.f32 %v212, 0.5
      %v405 = vmul.f32 %v213, 0.5
      %v406 = vmul.f32 %v214, 0.5
      %v407 = vmul.f32 %v215, 0.5
      %v408 = vmul.f32 %v216, 0.5
      %v409 = vmul.f32 %v217, 0.5
      %v410 = vmul.f32 %v218, 0.5
      %v411 = vmul.f32 %v219, 0.5
      %v412 = vmul.f32 %v220, 0.5
      %v413 = vmul.f32 %v221, 0.5
      %v414 = vmul.f32 %v222, 0.5
      %v415 = vmul.f32 %v223, 0.5
      %v416 = vmul.f32 %v224, 0.5
      %v417 = vmul.f32 %v225, 0.5
      %v418 = vmul.f32 %v226, 0.5
      %v419 = vmul.f32 %v227, 0.5
      %v420 = vmul.f32 %v228, 0.5
      %v421 = vmul.f32 %v229, 0.5
      %v422 = vmul.f32 %v230, 0.5
      %v423 = vmul.f32 %v231, 0.5
      %v424 = vmul.f32 %v232, 0.5
      %v425 = vmul.f32 %v233, 0.5
      %v426 = vmul.f32 %v234, 0.5
      %v427 = vmul.f32 %v203, 0.044715
      %v428 = vmul.f32 %v204, 0.044715
      %v429 = vmul.f32 %v205, 0.044715
      %v430 = vmul.f32 %v206, 0.044715
      %v431 = vmul.f32 %v207, 0.044715
      %v432 = vmul.f32 %v208, 0.044715
      %v433 = vmul.f32 %v209, 0.044715
      %v434 = vmul.f32 %v210, 0.044715
      %v435 = vmul.f32 %v211, 0.044715
      %v436 = vmul.f32 %v212, 0.044715
      %v437 = vmul.f32 %v213, 0.044715
      %v438 = vmul.f32 %v214, 0.044715
      %v439 = vmul.f32 %v215, 0.044715
      %v440 = vmul.f32 %v216, 0.044715
      %v441 = vmul.f32 %v217, 0.044715
      %v442 = vmul.f32 %v218, 0.044715
      %v443 = vmul.f32 %v219, 0.044715
      %v444 = vmul.f32 %v220, 0.044715
      %v445 = vmul.f32 %v221, 0.044715
      %v446 = vmul.f32 %v222, 0.044715
      %v447 = vmul.f32 %v223, 0.044715
      %v448 = vmul.f32 %v224, 0.044715
      %v449 = vmul.f32 %v225, 0.044715
      %v450 = vmul.f32 %v226, 0.044715
      %v451 = vmul.f32 %v227, 0.044715
      %v452 = vmul.f32 %v228, 0.044715
      %v453 = vmul.f32 %v229, 0.044715
      %v454 = vmul.f32 %v230, 0.044715
      %v455 = vmul.f32 %v231, 0.044715
      %v456 = vmul.f32 %v232, 0.044715
      %v457 = vmul.f32 %v233, 0.044715
      %v458 = vmul.f32 %v234, 0.044715
      %v459 = vmul.f32 %v427, %v203
      %v460 = vmul.f32 %v428, %v204
      %v461 = vmul.f32 %v429, %v205
      %v462 = vmul.f32 %v430, %v206
      %v463 = vmul.f32 %v431, %v207
      %v464 = vmul.f32 %v432, %v208
      %v465 = vmul.f32 %v433, %v209
      %v466 = vmul.f32 %v434, %v210
      %v467 = vmul.f32 %v435, %v211
      %v468 = vmul.f32 %v436, %v212
      %v469 = vmul.f32 %v437, %v213
      %v470 = vmul.f32 %v438, %v214
      %v471 = vmul.f32 %v439, %v215
      %v472 = vmul.f32 %v440, %v216
      %v473 = vmul.f32 %v441, %v217
      %v474 = vmul.f32 %v442, %v218
      %v475 = vmul.f32 %v443, %v219
      %v476 = vmul.f32 %v444, %v220
      %v477 = vmul.f32 %v445, %v221
      %v478 = vmul.f32 %v446, %v222
      %v479 = vmul.f32 %v447, %v223
      %v480 = vmul.f32 %v448, %v224
      %v481 = vmul.f32 %v449, %v225
      %v482 = vmul.f32 %v450, %v226
      %v483 = vmul.f32 %v451, %v227
      %v484 = vmul.f32 %v452, %v228
      %v485 = vmul.f32 %v453, %v229
      %v486 = vmul.f32 %v454, %v230
      %v487 = vmul.f32 %v455, %v231
      %v488 = vmul.f32 %v456, %v232
      %v489 = vmul.f32 %v457, %v233
      %v490 = vmul.f32 %v458, %v234
      %v491 = vmul.f32 %v459, %v203
      %v492 = vmul.f32 %v460, %v204
      %v493 = vmul.f32 %v461, %v205
      %v494 = vmul.f32 %v462, %v206
      %v495 = vmul.f32 %v463, %v207
      %v496 = vmul.f32 %v464, %v208
      %v497 = vmul.f32 %v465, %v209
      %v498 = vmul.f32 %v466, %v210
      %v499 = vmul.f32 %v467, %v211
      %v500 = vmul.f32 %v468, %v212
      %v501 = vmul.f32 %v469, %v213
      %v502 = vmul.f32 %v470, %v214
      %v503 = vmul.f32 %v471, %v215
      %v504 = vmul.f32 %v472, %v216
      %v505 = vmul.f32 %v473, %v217
      %v506 = vmul.f32 %v474, %v218
      %v507 = vmul.f32 %v475, %v219
      %v508 = vmul.f32 %v476, %v220
      %v509 = vmul.f32 %v477, %v221
      %v510 = vmul.f32 %v478, %v222
      %v511 = vmul.f32 %v479, %v223
      %v512 = vmul.f32 %v480, %v224
      %v513 = vmul.f32 %v481, %v225
      %v514 = vmul.f32 %v482, %v226
      %v515 = vmul.f32 %v483, %v227
      %v516 = vmul.f32 %v484, %v228
      %v517 = vmul.f32 %v485, %v229
      %v518 = vmul.f32 %v486, %v230
      %v519 = vmul.f32 %v487, %v231
      %v520 = vmul.f32 %v488, %v232
      %v521 = vmul.f32 %v489, %v233
      %v522 = vmul.f32 %v490, %v234
      %v523 = vadd.f32 %v203, %v491
      %v524 = vadd.f32 %v204, %v492
      %v525 = vadd.f32 %v205, %v493
      %v526 = vadd.f32 %v206, %v494
      %v527 = vadd.f32 %v207, %v495
      %v528 = vadd.f32 %v208, %v496
      %v529 = vadd.f32 %v209, %v497
      %v530 = vadd.f32 %v210, %v498
      %v531 = vadd.f32 %v211, %v499
      %v532 = vadd.f32 %v212, %v500
      %v533 = vadd.f32 %v213, %v501
      %v534 = vadd.f32 %v214, %v502
      %v535 = vadd.f32 %v215, %v503
      %v536 = vadd.f32 %v216, %v504
      %v537 = vadd.f32 %v217, %v505
      %v538 = vadd.f32 %v218, %v506
      %v539 = vadd.f32 %v219, %v507
      %v540 = vadd.f32 %v220, %v508
      %v541 = vadd.f32 %v221, %v509
      %v542 = vadd.f32 %v222, %v510
      %v543 = vadd.f32 %v223, %v511
      %v544 = vadd.f32 %v224, %v512
      %v545 = vadd.f32 %v225, %v513
      %v546 = vadd.f32 %v226, %v514
      %v547 = vadd.f32 %v227, %v515
      %v548 = vadd.f32 %v228, %v516
      %v549 = vadd.f32 %v229, %v517
      %v550 = vadd.f32 %v230, %v518
      %v551 = vadd.f32 %v231, %v519
      %v552 = vadd.f32 %v232, %v520
      %v553 = vadd.f32 %v233, %v521
      %v554 = vadd.f32 %v234, %v522
      %v555 = vmul.f32 %v523, 0.7978846
      %v556 = vmul.f32 %v524, 0.7978846
      %v557 = vmul.f32 %v525, 0.7978846
      %v558 = vmul.f32 %v526, 0.7978846
      %v559 = vmul.f32 %v527, 0.7978846
      %v560 = vmul.f32 %v528, 0.7978846
      %v561 = vmul.f32 %v529, 0.7978846
      %v562 = vmul.f32 %v530, 0.7978846
      %v563 = vmul.f32 %v531, 0.7978846
      %v564 = vmul.f32 %v532, 0.7978846
      %v565 = vmul.f32 %v533, 0.7978846
      %v566 = vmul.f32 %v534, 0.7978846
      %v567 = vmul.f32 %v535, 0.7978846
      %v568 = vmul.f32 %v536, 0.7978846
      %v569 = vmul.f32 %v537, 0.7978846
      %v570 = vmul.f32 %v538, 0.7978846
      %v571 = vmul.f32 %v539, 0.7978846
      %v572 = vmul.f32 %v540, 0.7978846
      %v573 = vmul.f32 %v541, 0.7978846
      %v574 = vmul.f32 %v542, 0.7978846
      %v575 = vmul.f32 %v543, 0.7978846
      %v576 = vmul.f32 %v544, 0.7978846
      %v577 = vmul.f32 %v545, 0.7978846
      %v578 = vmul.f32 %v546, 0.7978846
      %v579 = vmul.f32 %v547, 0.7978846
      %v580 = vmul.f32 %v548, 0.7978846
      %v581 = vmul.f32 %v549, 0.7978846
      %v582 = vmul.f32 %v550, 0.7978846
      %v583 = vmul.f32 %v551, 0.7978846
      %v584 = vmul.f32 %v552, 0.7978846
      %v585 = vmul.f32 %v553, 0.7978846
      %v586 = vmul.f32 %v554, 0.7978846
      %v587 = vtanh.pop %v555
      %v588 = vtanh.pop %v556
      %v589 = vtanh.pop %v557
      %v590 = vtanh.pop %v558
      %v591 = vtanh.pop %v559
      %v592 = vtanh.pop %v560
      %v593 = vtanh.pop %v561
      %v594 = vtanh.pop %v562
      %v595 = vtanh.pop %v563
      %v596 = vtanh.pop %v564
      %v597 = vtanh.pop %v565
      %v598 = vtanh.pop %v566
      %v599 = vtanh.pop %v567
      %v600 = vtanh.pop %v568
      %v601 = vtanh.pop %v569
      %v602 = vtanh.pop %v570
      %v603 = vtanh.pop %v571
      %v604 = vtanh.pop %v572
      %v605 = vtanh.pop %v573
      %v606 = vtanh.pop %v574
      %v607 = vtanh.pop %v575
      %v608 = vtanh.pop %v576
      %v609 = vtanh.pop %v577
      %v610 = vtanh.pop %v578
      %v611 = vtanh.pop %v579
      %v612 = vtanh.pop %v580
      %v613 = vtanh.pop %v581
      %v614 = vtanh.pop %v582
      %v615 = vtanh.pop %v583
      %v616 = vtanh.pop %v584
      %v617 = vtanh.pop %v585
      %v618 = vtanh.pop %v586
      %v619 = vadd.f32 %v587, 1.0
      %v620 = vadd.f32 %v588, 1.0
      %v621 = vadd.f32 %v589, 1.0
      %v622 = vadd.f32 %v590, 1.0
      %v623 = vadd.f32 %v591, 1.0
      %v624 = vadd.f32 %v592, 1.0
      %v625 = vadd.f32 %v593, 1.0
      %v626 = vadd.f32 %v594, 1.0
      %v627 = vadd.f32 %v595, 1.0
      %v628 = vadd.f32 %v596, 1.0
      %v629 = vadd.f32 %v597, 1.0
      %v630 = vadd.f32 %v598, 1.0
      %v631 = vadd.f32 %v599, 1.0
      %v632 = vadd.f32 %v600, 1.0
      %v633 = vadd.f32 %v601, 1.0
      %v634 = vadd.f32 %v602, 1.0
      %v635 = vadd.f32 %v603, 1.0
      %v636 = vadd.f32 %v604, 1.0
      %v637 = vadd.f32 %v605, 1.0
      %v638 = vadd.f32 %v606, 1.0
      %v639 = vadd.f32 %v607, 1.0
      %v640 = vadd.f32 %v608, 1.0
      %v641 = vadd.f32 %v609, 1.0
      %v642 = vadd.f32 %v610, 1.0
      %v643 = vadd.f32 %v611, 1.0
      %v644 = vadd.f32 %v612, 1.0
      %v645 = vadd.f32 %v613, 1.0
      %v646 = vadd.f32 %v614, 1.0
      %v647 = vadd.f32 %v615, 1.0
      %v648 = vadd.f32 %v616, 1.0
      %v649 = vadd.f32 %v617, 1.0
      %v650 = vadd.f32 %v618, 1.0
      %v651 = vmul.f32 %v395, %v619
      %v652 = vmul.f32 %v396, %v620
      %v653 = vmul.f32 %v397, %v621
      %v654 = vmul.f32 %v398, %v622
      %v655 = vmul.f32 %v399, %v623
      %v656 = vmul.f32 %v400, %v624
      %v657 = vmul.f32 %v401, %v625
      %v658 = vmul.f32 %v402, %v626
      %v659 = vmul.f32 %v403, %v627
      %v660 = vmul.f32 %v404, %v628
      %v661 = vmul.f32 %v405, %v629
      %v662 = vmul.f32 %v406, %v630
      %v663 = vmul.f32 %v407, %v631
      %v664 = vmul.f32 %v408, %v632
      %v665 = vmul.f32 %v409, %v633
      %v666 = vmul.f32 %v410, %v634
      %v667 = vmul.f32 %v411, %v635
      %v668 = vmul.f32 %v412, %v636
      %v669 = vmul.f32 %v413, %v637
      %v670 = vmul.f32 %v414, %v638
      %v671 = vmul.f32 %v415, %v639
      %v672 = vmul.f32 %v416, %v640
      %v673 = vmul.f32 %v417, %v641
      %v674 = vmul.f32 %v418, %v642
      %v675 = vmul.f32 %v419, %v643
      %v676 = vmul.f32 %v420, %v644
      %v677 = vmul.f32 %v421, %v645
      %v678 = vmul.f32 %v422, %v646
      %v679 = vmul.f32 %v423, %v647
      %v680 = vmul.f32 %v424, %v648
      %v681 = vmul.f32 %v425, %v649
      %v682 = vmul.f32 %v426, %v650
      %v683 = vld [vmem:[%s165] sm:$0xff]
      %v684 = vld [vmem:[%s165 + $0x8] sm:$0xff]
      %v685 = vld [vmem:[%s165 + $0x10] sm:$0xff]
      %v686 = vld [vmem:[%s165 + $0x18] sm:$0xff]
      %v687 = vld [vmem:[%s165 + $0x20] sm:$0xff]
      %v688 = vld [vmem:[%s165 + $0x28] sm:$0xff]
      %v689 = vld [vmem:[%s165 + $0x30] sm:$0xff]
      %v690 = vld [vmem:[%s165 + $0x38] sm:$0xff]
      %v691 = vld [vmem:[%s165 + $0x40] sm:$0xff]
      %v692 = vld [vmem:[%s165 + $0x48] sm:$0xff]
      %v693 = vld [vmem:[%s165 + $0x50] sm:$0xff]
      %v694 = vld [vmem:[%s165 + $0x58] sm:$0xff]
      %v695 = vld [vmem:[%s165 + $0x60] sm:$0xff]
      %v696 = vld [vmem:[%s165 + $0x68] sm:$0xff]
      %v697 = vld [vmem:[%s165 + $0x70] sm:$0xff]
      %v698 = vld [vmem:[%s165 + $0x78] sm:$0xff]
      %699 = vmatpush.msra.mxu0 %v698
      %700 = vmatpush.msra.mxu0 %v697
      %701 = vmatpush.msra.mxu0 %v696
      %702 = vmatpush.msra.mxu0 %v695
      %703 = vmatpush.msra.mxu0 %v694
      %704 = vmatpush.msra.mxu0 %v693
      %705 = vmatpush.msra.mxu0 %v692
      %706 = vmatpush.msra.mxu0 %v691
      %707 = vmatpush.msra.mxu0 %v690
      %708 = vmatpush.msra.mxu0 %v689
      %709 = vmatpush.msra.mxu0 %v688
      %710 = vmatpush.msra.mxu0 %v687
      %711 = vmatpush.msra.mxu0 %v686
      %712 = vmatpush.msra.mxu0 %v685
      %713 = vmatpush.msra.mxu0 %v684
      %714 = vmatpush.msra.mxu0 %v683
      %715 = vmatmul.f32.gmra.mxu0 %v171
      %v716 = vpop.f32.mrf.mxu0
      %v717 = vadd.f32 %v238, %v716
      %718 = vmatmul.f32.gmra.mxu0 %v172
      %v719 = vpop.f32.mrf.mxu0
      %v720 = vadd.f32 %v243, %v719
      %721 = vmatmul.f32.gmra.mxu0 %v173
      %v722 = vpop.f32.mrf.mxu0
      %v723 = vadd.f32 %v248, %v722
      %724 = vmatmul.f32.gmra.mxu0 %v174
      %v725 = vpop.f32.mrf.mxu0
      %v726 = vadd.f32 %v253, %v725
      %727 = vmatmul.f32.gmra.mxu0 %v175
      %v728 = vpop.f32.mrf.mxu0
      %v729 = vadd.f32 %v258, %v728
      %730 = vmatmul.f32.gmra.mxu0 %v176
      %v731 = vpop.f32.mrf.mxu0
      %v732 = vadd.f32 %v263, %v731
      %733 = vmatmul.f32.gmra.mxu0 %v177
      %v734 = vpop.f32.mrf.mxu0
      %v735 = vadd.f32 %v268, %v734
      %736 = vmatmul.f32.gmra.mxu0 %v178
      %v737 = vpop.f32.mrf.mxu0
      %v738 = vadd.f32 %v273, %v737
      %739 = vmatmul.f32.gmra.mxu0 %v179
      %v740 = vpop.f32.mrf.mxu0
      %v741 = vadd.f32 %v278, %v740
      %742 = vmatmul.f32.gmra.mxu0 %v180
      %v743 = vpop.f32.mrf.mxu0
      %v744 = vadd.f32 %v283, %v743
      %745 = vmatmul.f32.gmra.mxu0 %v181
      %v746 = vpop.f32.mrf.mxu0
      %v747 = vadd.f32 %v288, %v746
      %748 = vmatmul.f32.gmra.mxu0 %v182
      %v749 = vpop.f32.mrf.mxu0
      %v750 = vadd.f32 %v293, %v749
      %751 = vmatmul.f32.gmra.mxu0 %v183
      %v752 = vpop.f32.mrf.mxu0
      %v753 = vadd.f32 %v298, %v752
      %754 = vmatmul.f32.gmra.mxu0 %v184
      %v755 = vpop.f32.mrf.mxu0
      %v756 = vadd.f32 %v303, %v755
      %757 = vmatmul.f32.gmra.mxu0 %v185
      %v758 = vpop.f32.mrf.mxu0
      %v759 = vadd.f32 %v308, %v758
      %760 = vmatmul.f32.gmra.mxu0 %v186
      %v761 = vpop.f32.mrf.mxu0
      %v762 = vadd.f32 %v313, %v761
      %763 = vmatmul.f32.gmra.mxu0 %v187
      %v764 = vpop.f32.mrf.mxu0
      %v765 = vadd.f32 %v318, %v764
      %766 = vmatmul.f32.gmra.mxu0 %v188
      %v767 = vpop.f32.mrf.mxu0
      %v768 = vadd.f32 %v323, %v767
      %769 = vmatmul.f32.gmra.mxu0 %v189
      %v770 = vpop.f32.mrf.mxu0
      %v771 = vadd.f32 %v328, %v770
      %772 = vmatmul.f32.gmra.mxu0 %v190
      %v773 = vpop.f32.mrf.mxu0
      %v774 = vadd.f32 %v333, %v773
      %775 = vmatmul.f32.gmra.mxu0 %v191
      %v776 = vpop.f32.mrf.mxu0
      %v777 = vadd.f32 %v338, %v776
      %778 = vmatmul.f32.gmra.mxu0 %v192
      %v779 = vpop.f32.mrf.mxu0
      %v780 = vadd.f32 %v343, %v779
      %781 = vmatmul.f32.gmra.mxu0 %v193
      %v782 = vpop.f32.mrf.mxu0
      %v783 = vadd.f32 %v348, %v782
      %784 = vmatmul.f32.gmra.mxu0 %v194
      %v785 = vpop.f32.mrf.mxu0
      %v786 = vadd.f32 %v353, %v785
      %787 = vmatmul.f32.gmra.mxu0 %v195
      %v788 = vpop.f32.mrf.mxu0
      %v789 = vadd.f32 %v358, %v788
      %790 = vmatmul.f32.gmra.mxu0 %v196
      %v791 = vpop.f32.mrf.mxu0
      %v792 = vadd.f32 %v363, %v791
      %793 = vmatmul.f32.gmra.mxu0 %v197
      %v794 = vpop.f32.mrf.mxu0
      %v795 = vadd.f32 %v368, %v794
      %796 = vmatmul.f32.gmra.mxu0 %v198
      %v797 = vpop.f32.mrf.mxu0
      %v798 = vadd.f32 %v373, %v797
      %799 = vmatmul.f32.gmra.mxu0 %v199
      %v800 = vpop.f32.mrf.mxu0
      %v801 = vadd.f32 %v378, %v800
      %802 = vmatmul.f32.gmra.mxu0 %v200
      %v803 = vpop.f32.mrf.mxu0
      %v804 = vadd.f32 %v383, %v803
      %805 = vmatmul.f32.gmra.mxu0 %v201
      %v806 = vpop.f32.mrf.mxu0
      %v807 = vadd.f32 %v388, %v806
      %808 = vmatmul.f32.gmra.mxu0 %v202
      %v809 = vpop.f32.mrf.mxu0
      %v810 = vadd.f32 %v393, %v809
      %811 = vdwg.mxu0
      %v812 = vmul.f32 %v717, 0.5
      %v813 = vmul.f32 %v720, 0.5
      %v814 = vmul.f32 %v723, 0.5
      %v815 = vmul.f32 %v726, 0.5
      %v816 = vmul.f32 %v729, 0.5
      %v817 = vmul.f32 %v732, 0.5
      %v818 = vmul.f32 %v735, 0.5
      %v819 = vmul.f32 %v738, 0.5
      %v820 = vmul.f32 %v741, 0.5
      %v821 = vmul.f32 %v744, 0.5
      %v822 = vmul.f32 %v747, 0.5
      %v823 = vmul.f32 %v750, 0.5
      %v824 = vmul.f32 %v753, 0.5
      %v825 = vmul.f32 %v756, 0.5
      %v826 = vmul.f32 %v759, 0.5
      %v827 = vmul.f32 %v762, 0.5
      %v828 = vmul.f32 %v765, 0.5
      %v829 = vmul.f32 %v768, 0.5
      %v830 = vmul.f32 %v771, 0.5
      %v831 = vmul.f32 %v774, 0.5
      %v832 = vmul.f32 %v777, 0.5
      %v833 = vmul.f32 %v780, 0.5
      %v834 = vmul.f32 %v783, 0.5
      %v835 = vmul.f32 %v786, 0.5
      %v836 = vmul.f32 %v789, 0.5
      %v837 = vmul.f32 %v792, 0.5
      %v838 = vmul.f32 %v795, 0.5
      %v839 = vmul.f32 %v798, 0.5
      %v840 = vmul.f32 %v801, 0.5
      %v841 = vmul.f32 %v804, 0.5
      %v842 = vmul.f32 %v807, 0.5
      %v843 = vmul.f32 %v810, 0.5
      %v844 = vmul.f32 %v717, 0.044715
      %v845 = vmul.f32 %v720, 0.044715
      %v846 = vmul.f32 %v723, 0.044715
      %v847 = vmul.f32 %v726, 0.044715
      %v848 = vmul.f32 %v729, 0.044715
      %v849 = vmul.f32 %v732, 0.044715
      %v850 = vmul.f32 %v735, 0.044715
      %v851 = vmul.f32 %v738, 0.044715
      %v852 = vmul.f32 %v741, 0.044715
      %v853 = vmul.f32 %v744, 0.044715
      %v854 = vmul.f32 %v747, 0.044715
      %v855 = vmul.f32 %v750, 0.044715
      %v856 = vmul.f32 %v753, 0.044715
      %v857 = vmul.f32 %v756, 0.044715
      %v858 = vmul.f32 %v759, 0.044715
      %v859 = vmul.f32 %v762, 0.044715
      %v860 = vmul.f32 %v765, 0.044715
      %v861 = vmul.f32 %v768, 0.044715
      %v862 = vmul.f32 %v771, 0.044715
      %v863 = vmul.f32 %v774, 0.044715
      %v864 = vmul.f32 %v777, 0.044715
      %v865 = vmul.f32 %v780, 0.044715
      %v866 = vmul.f32 %v783, 0.044715
      %v867 = vmul.f32 %v786, 0.044715
      %v868 = vmul.f32 %v789, 0.044715
      %v869 = vmul.f32 %v792, 0.044715
      %v870 = vmul.f32 %v795, 0.044715
      %v871 = vmul.f32 %v798, 0.044715
      %v872 = vmul.f32 %v801, 0.044715
      %v873 = vmul.f32 %v804, 0.044715
      %v874 = vmul.f32 %v807, 0.044715
      %v875 = vmul.f32 %v810, 0.044715
      %v876 = vmul.f32 %v844, %v717
      %v877 = vmul.f32 %v845, %v720
      %v878 = vmul.f32 %v846, %v723
      %v879 = vmul.f32 %v847, %v726
      %v880 = vmul.f32 %v848, %v729
      %v881 = vmul.f32 %v849, %v732
      %v882 = vmul.f32 %v850, %v735
      %v883 = vmul.f32 %v851, %v738
      %v884 = vmul.f32 %v852, %v741
      %v885 = vmul.f32 %v853, %v744
      %v886 = vmul.f32 %v854, %v747
      %v887 = vmul.f32 %v855, %v750
      %v888 = vmul.f32 %v856, %v753
      %v889 = vmul.f32 %v857, %v756
      %v890 = vmul.f32 %v858, %v759
      %v891 = vmul.f32 %v859, %v762
      %v892 = vmul.f32 %v860, %v765
      %v893 = vmul.f32 %v861, %v768
      %v894 = vmul.f32 %v862, %v771
      %v895 = vmul.f32 %v863, %v774
      %v896 = vmul.f32 %v864, %v777
      %v897 = vmul.f32 %v865, %v780
      %v898 = vmul.f32 %v866, %v783
      %v899 = vmul.f32 %v867, %v786
      %v900 = vmul.f32 %v868, %v789
      %v901 = vmul.f32 %v869, %v792
      %v902 = vmul.f32 %v870, %v795
      %v903 = vmul.f32 %v871, %v798
      %v904 = vmul.f32 %v872, %v801
      %v905 = vmul.f32 %v873, %v804
      %v906 = vmul.f32 %v874, %v807
      %v907 = vmul.f32 %v875, %v810
      %v908 = vmul.f32 %v876, %v717
      %v909 = vmul.f32 %v877, %v720
      %v910 = vmul.f32 %v878, %v723
      %v911 = vmul.f32 %v879, %v726
      %v912 = vmul.f32 %v880, %v729
      %v913 = vmul.f32 %v881, %v732
      %v914 = vmul.f32 %v882, %v735
      %v915 = vmul.f32 %v883, %v738
      %v916 = vmul.f32 %v884, %v741
      %v917 = vmul.f32 %v885, %v744
      %v918 = vmul.f32 %v886, %v747
      %v919 = vmul.f32 %v887, %v750
      %v920 = vmul.f32 %v888, %v753
      %v921 = vmul.f32 %v889, %v756
      %v922 = vmul.f32 %v890, %v759
      %v923 = vmul.f32 %v891, %v762
      %v924 = vmul.f32 %v892, %v765
      %v925 = vmul.f32 %v893, %v768
      %v926 = vmul.f32 %v894, %v771
      %v927 = vmul.f32 %v895, %v774
      %v928 = vmul.f32 %v896, %v777
      %v929 = vmul.f32 %v897, %v780
      %v930 = vmul.f32 %v898, %v783
      %v931 = vmul.f32 %v899, %v786
      %v932 = vmul.f32 %v900, %v789
      %v933 = vmul.f32 %v901, %v792
      %v934 = vmul.f32 %v902, %v795
      %v935 = vmul.f32 %v903, %v798
      %v936 = vmul.f32 %v904, %v801
      %v937 = vmul.f32 %v905, %v804
      %v938 = vmul.f32 %v906, %v807
      %v939 = vmul.f32 %v907, %v810
      %v940 = vadd.f32 %v717, %v908
      %v941 = vadd.f32 %v720, %v909
      %v942 = vadd.f32 %v723, %v910
      %v943 = vadd.f32 %v726, %v911
      %v944 = vadd.f32 %v729, %v912
      %v945 = vadd.f32 %v732, %v913
      %v946 = vadd.f32 %v735, %v914
      %v947 = vadd.f32 %v738, %v915
      %v948 = vadd.f32 %v741, %v916
      %v949 = vadd.f32 %v744, %v917
      %v950 = vadd.f32 %v747, %v918
      %v951 = vadd.f32 %v750, %v919
      %v952 = vadd.f32 %v753, %v920
      %v953 = vadd.f32 %v756, %v921
      %v954 = vadd.f32 %v759, %v922
      %v955 = vadd.f32 %v762, %v923
      %v956 = vadd.f32 %v765, %v924
      %v957 = vadd.f32 %v768, %v925
      %v958 = vadd.f32 %v771, %v926
      %v959 = vadd.f32 %v774, %v927
      %v960 = vadd.f32 %v777, %v928
      %v961 = vadd.f32 %v780, %v929
      %v962 = vadd.f32 %v783, %v930
      %v963 = vadd.f32 %v786, %v931
      %v964 = vadd.f32 %v789, %v932
      %v965 = vadd.f32 %v792, %v933
      %v966 = vadd.f32 %v795, %v934
      %v967 = vadd.f32 %v798, %v935
      %v968 = vadd.f32 %v801, %v936
      %v969 = vadd.f32 %v804, %v937
      %v970 = vadd.f32 %v807, %v938
      %v971 = vadd.f32 %v810, %v939
      %v972 = vmul.f32 %v940, 0.7978846
      %v973 = vmul.f32 %v941, 0.7978846
      %v974 = vmul.f32 %v942, 0.7978846
      %v975 = vmul.f32 %v943, 0.7978846
      %v976 = vmul.f32 %v944, 0.7978846
      %v977 = vmul.f32 %v945, 0.7978846
      %v978 = vmul.f32 %v946, 0.7978846
      %v979 = vmul.f32 %v947, 0.7978846
      %v980 = vmul.f32 %v948, 0.7978846
      %v981 = vmul.f32 %v949, 0.7978846
      %v982 = vmul.f32 %v950, 0.7978846
      %v983 = vmul.f32 %v951, 0.7978846
      %v984 = vmul.f32 %v952, 0.7978846
      %v985 = vmul.f32 %v953, 0.7978846
      %v986 = vmul.f32 %v954, 0.7978846
      %v987 = vmul.f32 %v955, 0.7978846
      %v988 = vmul.f32 %v956, 0.7978846
      %v989 = vmul.f32 %v957, 0.7978846
      %v990 = vmul.f32 %v958, 0.7978846
      %v991 = vmul.f32 %v959, 0.7978846
      %v992 = vmul.f32 %v960, 0.7978846
      %v993 = vmul.f32 %v961, 0.7978846
      %v994 = vmul.f32 %v962, 0.7978846
      %v995 = vmul.f32 %v963, 0.7978846
      %v996 = vmul.f32 %v964, 0.7978846
      %v997 = vmul.f32 %v965, 0.7978846
      %v998 = vmul.f32 %v966, 0.7978846
      %v999 = vmul.f32 %v967, 0.7978846
      %v1000 = vmul.f32 %v968, 0.7978846
      %v1001 = vmul.f32 %v969, 0.7978846
      %v1002 = vmul.f32 %v970, 0.7978846
      %v1003 = vmul.f32 %v971, 0.7978846
      %v1004 = vtanh.pop %v972
      %v1005 = vtanh.pop %v973
      %v1006 = vtanh.pop %v974
      %v1007 = vtanh.pop %v975
      %v1008 = vtanh.pop %v976
      %v1009 = vtanh.pop %v977
      %v1010 = vtanh.pop %v978
      %v1011 = vtanh.pop %v979
      %v1012 = vtanh.pop %v980
      %v1013 = vtanh.pop %v981
      %v1014 = vtanh.pop %v982
      %v1015 = vtanh.pop %v983
      %v1016 = vtanh.pop %v984
      %v1017 = vtanh.pop %v985
      %v1018 = vtanh.pop %v986
      %v1019 = vtanh.pop %v987
      %v1020 = vtanh.pop %v988
      %v1021 = vtanh.pop %v989
      %v1022 = vtanh.pop %v990
      %v1023 = vtanh.pop %v991
      %v1024 = vtanh.pop %v992
      %v1025 = vtanh.pop %v993
      %v1026 = vtanh.pop %v994
      %v1027 = vtanh.pop %v995
      %v1028 = vtanh.pop %v996
      %v1029 = vtanh.pop %v997
      %v1030 = vtanh.pop %v998
      %v1031 = vtanh.pop %v999
      %v1032 = vtanh.pop %v1000
      %v1033 = vtanh.pop %v1001
      %v1034 = vtanh.pop %v1002
      %v1035 = vtanh.pop %v1003
      %v1036 = vadd.f32 %v1004, 1.0
      %v1037 = vadd.f32 %v1005, 1.0
      %v1038 = vadd.f32 %v1006, 1.0
      %v1039 = vadd.f32 %v1007, 1.0
      %v1040 = vadd.f32 %v1008, 1.0
      %v1041 = vadd.f32 %v1009, 1.0
      %v1042 = vadd.f32 %v1010, 1.0
      %v1043 = vadd.f32 %v1011, 1.0
      %v1044 = vadd.f32 %v1012, 1.0
      %v1045 = vadd.f32 %v1013, 1.0
      %v1046 = vadd.f32 %v1014, 1.0
      %v1047 = vadd.f32 %v1015, 1.0
      %v1048 = vadd.f32 %v1016, 1.0
      %v1049 = vadd.f32 %v1017, 1.0
      %v1050 = vadd.f32 %v1018, 1.0
      %v1051 = vadd.f32 %v1019, 1.0
      %v1052 = vadd.f32 %v1020, 1.0
      %v1053 = vadd.f32 %v1021, 1.0
      %v1054 = vadd.f32 %v1022, 1.0
      %v1055 = vadd.f32 %v1023, 1.0
      %v1056 = vadd.f32 %v1024, 1.0
      %v1057 = vadd.f32 %v1025, 1.0
      %v1058 = vadd.f32 %v1026, 1.0
      %v1059 = vadd.f32 %v1027, 1.0
      %v1060 = vadd.f32 %v1028, 1.0
      %v1061 = vadd.f32 %v1029, 1.0
      %v1062 = vadd.f32 %v1030, 1.0
      %v1063 = vadd.f32 %v1031, 1.0
      %v1064 = vadd.f32 %v1032, 1.0
      %v1065 = vadd.f32 %v1033, 1.0
      %v1066 = vadd.f32 %v1034, 1.0
      %v1067 = vadd.f32 %v1035, 1.0
      %v1068 = vmul.f32 %v812, %v1036
      %v1069 = vmul.f32 %v813, %v1037
      %v1070 = vmul.f32 %v814, %v1038
      %v1071 = vmul.f32 %v815, %v1039
      %v1072 = vmul.f32 %v816, %v1040
      %v1073 = vmul.f32 %v817, %v1041
      %v1074 = vmul.f32 %v818, %v1042
      %v1075 = vmul.f32 %v819, %v1043
      %v1076 = vmul.f32 %v820, %v1044
      %v1077 = vmul.f32 %v821, %v1045
      %v1078 = vmul.f32 %v822, %v1046
      %v1079 = vmul.f32 %v823, %v1047
      %v1080 = vmul.f32 %v824, %v1048
      %v1081 = vmul.f32 %v825, %v1049
      %v1082 = vmul.f32 %v826, %v1050
      %v1083 = vmul.f32 %v827, %v1051
      %v1084 = vmul.f32 %v828, %v1052
      %v1085 = vmul.f32 %v829, %v1053
      %v1086 = vmul.f32 %v830, %v1054
      %v1087 = vmul.f32 %v831, %v1055
      %v1088 = vmul.f32 %v832, %v1056
      %v1089 = vmul.f32 %v833, %v1057
      %v1090 = vmul.f32 %v834, %v1058
      %v1091 = vmul.f32 %v835, %v1059
      %v1092 = vmul.f32 %v836, %v1060
      %v1093 = vmul.f32 %v837, %v1061
      %v1094 = vmul.f32 %v838, %v1062
      %v1095 = vmul.f32 %v839, %v1063
      %v1096 = vmul.f32 %v840, %v1064
      %v1097 = vmul.f32 %v841, %v1065
      %v1098 = vmul.f32 %v842, %v1066
      %v1099 = vmul.f32 %v843, %v1067
      %1100 = vst [vmem:[%s170] sm:$0xff] %v1068
      %1101 = vst [vmem:[%s170 + $0x8] sm:$0xff] %v1069
      %1102 = vst [vmem:[%s170 + $0x10] sm:$0xff] %v1070
      %1103 = vst [vmem:[%s170 + $0x18] sm:$0xff] %v1071
      %1104 = vst [vmem:[%s170 + $0x20] sm:$0xff] %v1072
      %1105 = vst [vmem:[%s170 + $0x28] sm:$0xff] %v1073
      %1106 = vst [vmem:[%s170 + $0x30] sm:$0xff] %v1074
      %1107 = vst [vmem:[%s170 + $0x38] sm:$0xff] %v1075
      %1108 = vst [vmem:[%s170 + $0x40] sm:$0xff] %v1076
      %1109 = vst [vmem:[%s170 + $0x48] sm:$0xff] %v1077
      %1110 = vst [vmem:[%s170 + $0x50] sm:$0xff] %v1078
      %1111 = vst [vmem:[%s170 + $0x58] sm:$0xff] %v1079
      %1112 = vst [vmem:[%s170 + $0x60] sm:$0xff] %v1080
      %1113 = vst [vmem:[%s170 + $0x68] sm:$0xff] %v1081
      %1114 = vst [vmem:[%s170 + $0x70] sm:$0xff] %v1082
      %1115 = vst [vmem:[%s170 + $0x78] sm:$0xff] %v1083
      %1116 = vst [vmem:[%s170 + $0x80] sm:$0xff] %v1084
      %1117 = vst [vmem:[%s170 + $0x88] sm:$0xff] %v1085
      %1118 = vst [vmem:[%s170 + $0x90] sm:$0xff] %v1086
      %1119 = vst [vmem:[%s170 + $0x98] sm:$0xff] %v1087
      %1120 = vst [vmem:[%s170 + $0xa0] sm:$0xff] %v1088
      %1121 = vst [vmem:[%s170 + $0xa8] sm:$0xff] %v1089
      %1122 = vst [vmem:[%s170 + $0xb0] sm:$0xff] %v1090
      %1123 = vst [vmem:[%s170 + $0xb8] sm:$0xff] %v1091
      %1124 = vst [vmem:[%s170 + $0xc0] sm:$0xff] %v1092
      %1125 = vst [vmem:[%s170 + $0xc8] sm:$0xff] %v1093
      %1126 = vst [vmem:[%s170 + $0xd0] sm:$0xff] %v1094
      %1127 = vst [vmem:[%s170 + $0xd8] sm:$0xff] %v1095
      %1128 = vst [vmem:[%s170 + $0xe0] sm:$0xff] %v1096
      %1129 = vst [vmem:[%s170 + $0xe8] sm:$0xff] %v1097
      %1130 = vst [vmem:[%s170 + $0xf0] sm:$0xff] %v1098
      %1131 = vst [vmem:[%s170 + $0xf8] sm:$0xff] %v1099
      %1133 = vset.pattern.permute.xlu0 0
      %1134 = vperm.xlu0 %1133, %v651
      %v1135 = vpop.permute.xlu0 %1134
      %1138 = vset.pattern.permute.xlu0 0
      %1139 = vperm.xlu0 %1138, %v652
      %v1140 = vpop.permute.xlu0 %1139
      %1143 = vset.pattern.permute.xlu0 0
      %1144 = vperm.xlu0 %1143, %v653
      %v1145 = vpop.permute.xlu0 %1144
      %1148 = vset.pattern.permute.xlu0 0
      %1149 = vperm.xlu0 %1148, %v654
      %v1150 = vpop.permute.xlu0 %1149
      %1153 = vset.pattern.permute.xlu0 0
      %1154 = vperm.xlu0 %1153, %v655
      %v1155 = vpop.permute.xlu0 %1154
      %1158 = vset.pattern.permute.xlu0 0
      %1159 = vperm.xlu0 %1158, %v656
      %v1160 = vpop.permute.xlu0 %1159
      %1163 = vset.pattern.permute.xlu0 0
      %1164 = vperm.xlu0 %1163, %v657
      %v1165 = vpop.permute.xlu0 %1164
      %1168 = vset.pattern.permute.xlu0 0
      %1169 = vperm.xlu0 %1168, %v658
      %v1170 = vpop.permute.xlu0 %1169
      %1173 = vset.pattern.permute.xlu0 0
      %1174 = vperm.xlu0 %1173, %v659
      %v1175 = vpop.permute.xlu0 %1174
      %1178 = vset.pattern.permute.xlu0 0
      %1179 = vperm.xlu0 %1178, %v660
      %v1180 = vpop.permute.xlu0 %1179
      %1183 = vset.pattern.permute.xlu0 0
      %1184 = vperm.xlu0 %1183, %v661
      %v1185 = vpop.permute.xlu0 %1184
      %1188 = vset.pattern.permute.xlu0 0
      %1189 = vperm.xlu0 %1188, %v662
      %v1190 = vpop.permute.xlu0 %1189
      %1193 = vset.pattern.permute.xlu0 0
      %1194 = vperm.xlu0 %1193, %v663
      %v1195 = vpop.permute.xlu0 %1194
      %1198 = vset.pattern.permute.xlu0 0
      %1199 = vperm.xlu0 %1198, %v664
      %v1200 = vpop.permute.xlu0 %1199
      %1203 = vset.pattern.permute.xlu0 0
      %1204 = vperm.xlu0 %1203, %v665
      %v1205 = vpop.permute.xlu0 %1204
      %1208 = vset.pattern.permute.xlu0 0
      %1209 = vperm.xlu0 %1208, %v666
      %v1210 = vpop.permute.xlu0 %1209
      %1213 = vset.pattern.permute.xlu0 0
      %1214 = vperm.xlu0 %1213, %v667
      %v1215 = vpop.permute.xlu0 %1214
      %1218 = vset.pattern.permute.xlu0 0
      %1219 = vperm.xlu0 %1218, %v668
      %v1220 = vpop.permute.xlu0 %1219
      %1223 = vset.pattern.permute.xlu0 0
      %1224 = vperm.xlu0 %1223, %v669
      %v1225 = vpop.permute.xlu0 %1224
      %1228 = vset.pattern.permute.xlu0 0
      %1229 = vperm.xlu0 %1228, %v670
      %v1230 = vpop.permute.xlu0 %1229
      %1233 = vset.pattern.permute.xlu0 0
      %1234 = vperm.xlu0 %1233, %v671
      %v1235 = vpop.permute.xlu0 %1234
      %1238 = vset.pattern.permute.xlu0 0
      %1239 = vperm.xlu0 %1238, %v672
      %v1240 = vpop.permute.xlu0 %1239
      %1243 = vset.pattern.permute.xlu0 0
      %1244 = vperm.xlu0 %1243, %v673
      %v1245 = vpop.permute.xlu0 %1244
      %1248 = vset.pattern.permute.xlu0 0
      %1249 = vperm.xlu0 %1248, %v674
      %v1250 = vpop.permute.xlu0 %1249
      %1253 = vset.pattern.permute.xlu0 0
      %1254 = vperm.xlu0 %1253, %v675
      %v1255 = vpop.permute.xlu0 %1254
      %1258 = vset.pattern.permute.xlu0 0
      %1259 = vperm.xlu0 %1258, %v676
      %v1260 = vpop.permute.xlu0 %1259
      %1263 = vset.pattern.permute.xlu0 0
      %1264 = vperm.xlu0 %1263, %v677
      %v1265 = vpop.permute.xlu0 %1264
      %1268 = vset.pattern.permute.xlu0 0
      %1269 = vperm.xlu0 %1268, %v678
      %v1270 = vpop.permute.xlu0 %1269
      %1273 = vset.pattern.permute.xlu0 0
      %1274 = vperm.xlu0 %1273, %v679
      %v1275 = vpop.permute.xlu0 %1274
      %1278 = vset.pattern.permute.xlu0 0
      %1279 = vperm.xlu0 %1278, %v680
      %v1280 = vpop.permute.xlu0 %1279
      %1283 = vset.pattern.permute.xlu0 0
      %1284 = vperm.xlu0 %1283, %v681
      %v1285 = vpop.permute.xlu0 %1284
      %1288 = vset.pattern.permute.xlu0 0
      %1289 = vperm.xlu0 %1288, %v682
      %v1290 = vpop.permute.xlu0 %1289
      %s1292 = scalar_lea.vmem %s170, 256
      %1293 = vst [vmem:[%s1292] sm:$0xff] %v1135
      %1294 = vst [vmem:[%s1292 + $0x8] sm:$0xff] %v1140
      %1295 = vst [vmem:[%s1292 + $0x10] sm:$0xff] %v1145
      %1296 = vst [vmem:[%s1292 + $0x18] sm:$0xff] %v1150
      %1297 = vst [vmem:[%s1292 + $0x20] sm:$0xff] %v1155
      %1298 = vst [vmem:[%s1292 + $0x28] sm:$0xff] %v1160
      %1299 = vst [vmem:[%s1292 + $0x30] sm:$0xff] %v1165
      %1300 = vst [vmem:[%s1292 + $0x38] sm:$0xff] %v1170
      %1301 = vst [vmem:[%s1292 + $0x40] sm:$0xff] %v1175
      %1302 = vst [vmem:[%s1292 + $0x48] sm:$0xff] %v1180
      %1303 = vst [vmem:[%s1292 + $0x50] sm:$0xff] %v1185
      %1304 = vst [vmem:[%s1292 + $0x58] sm:$0xff] %v1190
      %1305 = vst [vmem:[%s1292 + $0x60] sm:$0xff] %v1195
      %1306 = vst [vmem:[%s1292 + $0x68] sm:$0xff] %v1200
      %1307 = vst [vmem:[%s1292 + $0x70] sm:$0xff] %v1205
      %1308 = vst [vmem:[%s1292 + $0x78] sm:$0xff] %v1210
      %1309 = vst [vmem:[%s1292 + $0x80] sm:$0xff] %v1215
      %1310 = vst [vmem:[%s1292 + $0x88] sm:$0xff] %v1220
      %1311 = vst [vmem:[%s1292 + $0x90] sm:$0xff] %v1225
      %1312 = vst [vmem:[%s1292 + $0x98] sm:$0xff] %v1230
      %1313 = vst [vmem:[%s1292 + $0xa0] sm:$0xff] %v1235
      %1314 = vst [vmem:[%s1292 + $0xa8] sm:$0xff] %v1240
      %1315 = vst [vmem:[%s1292 + $0xb0] sm:$0xff] %v1245
      %1316 = vst [vmem:[%s1292 + $0xb8] sm:$0xff] %v1250
      %1317 = vst [vmem:[%s1292 + $0xc0] sm:$0xff] %v1255
      %1318 = vst [vmem:[%s1292 + $0xc8] sm:$0xff] %v1260
      %1319 = vst [vmem:[%s1292 + $0xd0] sm:$0xff] %v1265
      %1320 = vst [vmem:[%s1292 + $0xd8] sm:$0xff] %v1270
      %1321 = vst [vmem:[%s1292 + $0xe0] sm:$0xff] %v1275
      %1322 = vst [vmem:[%s1292 + $0xe8] sm:$0xff] %v1280
      %1323 = vst [vmem:[%s1292 + $0xf0] sm:$0xff] %v1285
      %1324 = vst [vmem:[%s1292 + $0xf8] sm:$0xff] %v1290
      %p1325 = scmp.lt.s32.totalorder %s14, 1
      %s1326 = scalar_select %p1325, %s14, 1
      %s1327 = smul.addr %s1326, 64
      %s1328 = smul.addr %s1327, 8
      %s1329 = scalar_lea.vmem %s3, %s1328
      // Predicated region
      $region33: #{model_forward.1} parent=31 // pred_check
        %p1330 = pneg %p100
      $region34: #{model_forward.1} parent=31 // pred_check_branch
        %1332 = sbr.rel (%p1330) target = $region36
      $region35: #{model_forward.1} parent=31 // pred_region
        _
      $region36: #{model_forward.1} parent=31 // pred_fallthru
        _
    $region32: #{model_forward.1} parent=5 // pred_fallthru
      _
    %p1333 = scmp.le.s32.totalorder 2, %s9
    // Predicated region
    $region37: #{model_forward.1} parent=5 // pred_check
      %p1334 = pneg %p1333
    $region38: #{model_forward.1} parent=5 // pred_check_branch
      %1336 = sbr.rel (%p1334) target = $region40
    $region39: #{model_forward.1} parent=5 // pred_region
      %s1337 = ssub.s32 %s9, 2
      // Predicated region
      $region41: #{model_forward.1} parent=39 // pred_check
        %p1338 = pneg %p106
      $region42: #{model_forward.1} parent=39 // pred_check_branch
        %1340 = sbr.rel (%p1338) target = $region44
      $region43: #{model_forward.1} parent=39 // pred_region
        %p1341 = scmp.lt.s32.totalorder %s15, 1
        %s1342 = scalar_select %p1341, %s15, 1
        %s1343 = smul.addr %s1342, 64
        %s1344 = smul.addr %s1343, 8
        %s1345 = scalar_lea.vmem %s3, %s1344
      $region44: #{model_forward.1} parent=39 // pred_fallthru
        _
    $region40: #{model_forward.1} parent=5 // pred_fallthru
      _
  $region6: #{model_forward.1} parent=0 // loop_footer
    %s13 = sadd.s32 1, %s9
  $region7: #{model_forward.1} parent=0 // loop_footer_branch
    %8 = sbr.rel target = $region3
  $region8: #{model_forward.1} parent=0 // loop_exit
    _

</llo_original>
